<compile_context>
chip_gen: v5e
topology: v5e:2x2
jax: 0.10.0
libtpu: 0.0.40
codegen_flags: <defaults>
</compile_context>

<pallas_src>
import jax
import jax.numpy as jnp
from jax.experimental import pallas as pl
from jax.experimental.pallas import tpu as pltpu


def _round_up(x, m):
    return ((x + m - 1) // m) * m


def _vmem_capacity_bytes():
    """Physical VMEM of the local chip; conservative (v7x, 64 MiB) fallback."""
    try:
        info = pltpu.get_tpu_info()
        cap = getattr(info, "vmem_capacity_bytes", None)
        if cap:
            return int(cap)
    except Exception:
        pass
    return 64 * 1024 * 1024


def _vae_kernel(
    x_ref, eps_ref,
    we1_ref, be1_ref,
    wmulv_ref, bmulv_ref,
    wd1_ref, bd1_ref,
    wd2_ref, bd2_ref,
    xrec_ref, stats_ref,
):
    x = x_ref[...]                  # (TB, D) bf16 (cast in wrapper -> half input DMA)
    eps = eps_ref[...]              # (TB, L) f32
    L = eps.shape[1]

    # ---- encode: bf16 MXU inputs, f32 accumulation ----
    h = jnp.dot(x, we1_ref[...], preferred_element_type=jnp.float32) + be1_ref[...]
    h = jnp.maximum(h, 0.0)         # ReLU (f32 VPU)

    # fused mu | logvar projection: one (d_hidden, 2L) matmul
    mulv = jnp.dot(h.astype(jnp.bfloat16), wmulv_ref[...],
                   preferred_element_type=jnp.float32) + bmulv_ref[...]
    mu = mulv[:, :L]
    lv = mulv[:, L:]

    # ---- reparameterize: z = mu + eps * exp(0.5 * logvar)  (f32) ----
    z = mu + eps * jnp.exp(0.5 * lv)

    # ---- decode ----
    hd = jnp.dot(z.astype(jnp.bfloat16), wd1_ref[...],
                 preferred_element_type=jnp.float32) + bd1_ref[...]
    hd = jnp.maximum(hd, 0.0)
    logits = jnp.dot(hd.astype(jnp.bfloat16), wd2_ref[...],
                     preferred_element_type=jnp.float32) + bd2_ref[...]

    # exact sigmoid via a single EUP op per element (tanh); f32 math, bf16 store
    xrec = 0.5 * jnp.tanh(0.5 * logits) + 0.5
    xrec_ref[...] = xrec.astype(xrec_ref.dtype)      # bf16 store -> half output DMA

    # Narrow latent outputs [mu | logvar | z]: two contiguous slice stores,
    # no XLU concatenate (mulv is already the contiguous [mu | logvar] block).
    stats_ref[:, : 2 * L] = mulv
    stats_ref[:, 2 * L:] = z


def prepare_params(params):
    """One-time, cacheable kernel-ready parameter prep (hoisted out of the per-call
    path): bf16 weight casts + fused mu/logvar projection + fused biases."""
    return {
        "w_e1": params["w_e1"].astype(jnp.bfloat16),
        "b_e1": params["b_e1"].astype(jnp.float32),
        "w_mulv": jnp.concatenate([params["w_mu"], params["w_lv"]],
                                  axis=1).astype(jnp.bfloat16),
        "b_mulv": jnp.concatenate([params["b_mu"], params["b_lv"]],
                                  axis=1).astype(jnp.float32),
        "w_d1": params["w_d1"].astype(jnp.bfloat16),
        "b_d1": params["b_d1"].astype(jnp.float32),
        "w_d2": params["w_d2"].astype(jnp.bfloat16),
        "b_d2": params["b_d2"].astype(jnp.float32),
        "d_latent": int(params["w_mu"].shape[1]),
    }


def vae_forward(x_nchw, eps, prepped):
    """Full VAE forward pass in one Pallas call.

    x_nchw:  (B, C, H, W) float input
    eps:     (B, L) standard-normal noise (torch.randn equivalent)
    prepped: output of prepare_params(params)
    Returns (x_rec_nchw [bf16], mu, logvar, z).
    """
    B, C, H, W = x_nchw.shape
    D = C * H * W
    L = prepped["d_latent"]

    w_e1, b_e1 = prepped["w_e1"], prepped["b_e1"]
    w_mulv, b_mulv = prepped["w_mulv"], prepped["b_mulv"]
    w_d1, b_d1 = prepped["w_d1"], prepped["b_d1"]
    w_d2, b_d2 = prepped["w_d2"], prepped["b_d2"]
    weight_args = (w_e1, b_e1, w_mulv, b_mulv, w_d1, b_d1, w_d2, b_d2)

    # ---- generation-aware VMEM budgeting & batch tiling ----
    vmem_cap = _vmem_capacity_bytes()
    weight_bytes = sum(int(a.size) * a.dtype.itemsize for a in weight_args)
    # Double-buffered per-row activation bytes: x(bf16)+eps(f32) in, xrec(bf16)+stats(f32) out.
    per_row = 2 * (D * 2 + L * 4 + D * 2 + 3 * L * 4)
    tile_budget = int(0.55 * vmem_cap) - 2 * weight_bytes   # weights double-buffered by Pallas
    tile_cap = max(8, min(1024, (max(tile_budget, 0) // max(per_row, 1)) // 8 * 8))

    B_pad = _round_up(B, 8)
    target_steps = 4 if B_pad >= 32 else 2                  # >= 2 grid steps, ideally >= 4
    tile_from_steps = max(8, _round_up((B_pad + target_steps - 1) // target_steps, 8))
    TILE_B = max(8, min(tile_cap, tile_from_steps))
    B_pad = _round_up(B_pad, TILE_B)
    steps = B_pad // TILE_B
    if steps < 2:                       # keep DMA/compute pipelining alive
        B_pad, steps = 2 * TILE_B, 2
    elif steps % 2:                     # even grid -> both v7x TensorCores get work
        B_pad, steps = B_pad + TILE_B, steps + 1

    # ---- activations: bf16 x in, f32 eps; pad batch ----
    x_flat = x_nchw.reshape(B, D).astype(jnp.bfloat16)
    eps_p = eps.astype(jnp.float32)
    if B_pad != B:
        x_flat = jnp.pad(x_flat, ((0, B_pad - B), (0, 0)))
        eps_p = jnp.pad(eps_p, ((0, B_pad - B), (0, 0)))

    grid = (steps,)

    def row_spec(n_cols):
        return pl.BlockSpec((TILE_B, n_cols), lambda i: (i, 0))

    def resident(arr):   # full-array block, constant index map -> stays in VMEM
        return pl.BlockSpec(arr.shape, lambda i: (0, 0))

    out_shapes = (
        jax.ShapeDtypeStruct((B_pad, D), jnp.bfloat16),      # x_rec (flat, bf16)
        jax.ShapeDtypeStruct((B_pad, 3 * L), jnp.float32),   # [mu | logvar | z]
    )

    # ~100 MiB limit on 128 MiB chips (v5e/v6e), ~50 MiB on 64 MiB v7x.
    vmem_limit = min(int(vmem_cap * 0.78), 100 * 1024 * 1024)

    xrec_flat, stats = pl.pallas_call(
        _vae_kernel,
        grid=grid,
        out_shape=out_shapes,
        in_specs=[
            row_spec(D),            # x (bf16)
            row_spec(L),            # eps (f32)
            resident(w_e1), resident(b_e1),
            resident(w_mulv), resident(b_mulv),
            resident(w_d1), resident(b_d1),
            resident(w_d2), resident(b_d2),
        ],
        out_specs=(row_spec(D), row_spec(3 * L)),
        compiler_params=pltpu.CompilerParams(
            dimension_semantics=("parallel",),
            vmem_limit_bytes=vmem_limit,
        ),
    )(
        x_flat, eps_p,
        w_e1, b_e1,
        w_mulv, b_mulv,
        w_d1, b_d1,
        w_d2, b_d2,
    )

    x_rec = xrec_flat[:B].reshape(B, C, H, W)   # bf16; cast downstream if f32 needed
    mu = stats[:B, :L]
    logvar = stats[:B, L:2 * L]
    z = stats[:B, 2 * L:]
    return x_rec, mu, logvar, z


def init_params(key, d_in, d_hidden, d_latent):
    """Deterministic small-scale parameter init (Xavier-ish uniform), f32 storage."""
    ks = jax.random.split(key, 10)

    def lin(kw, kb, fan_in, fan_out):
        bound = 1.0 / jnp.sqrt(jnp.float32(fan_in))
        w = jax.random.uniform(kw, (fan_in, fan_out), jnp.float32, -bound, bound)
        b = jax.random.uniform(kb, (1, fan_out), jnp.float32, -bound, bound)
        return w, b

    w_e1, b_e1 = lin(ks[0], ks[1], d_in, d_hidden)
    w_mu, b_mu = lin(ks[2], ks[3], d_hidden, d_latent)
    w_lv, b_lv = lin(ks[4], ks[5], d_hidden, d_latent)
    w_d1, b_d1 = lin(ks[6], ks[7], d_latent, d_hidden)
    w_d2, b_d2 = lin(ks[8], ks[9], d_hidden, d_in)

    return {
        "w_e1": w_e1, "b_e1": b_e1,
        "w_mu": w_mu, "b_mu": b_mu,
        "w_lv": w_lv, "b_lv": b_lv,
        "w_d1": w_d1, "b_d1": b_d1,
        "w_d2": w_d2, "b_d2": b_d2,
    }


def vae_forward_ref(x_nchw, eps, params):
    """Pure-JAX reference of the same forward pass (same bf16 matmul precision)."""
    B, C, H, W = x_nchw.shape
    x = x_nchw.reshape(B, -1)

    def mm(a, w):
        return jnp.dot(a.astype(jnp.bfloat16), w.astype(jnp.bfloat16),
                       preferred_element_type=jnp.float32)

    h = jnp.maximum(mm(x, params["w_e1"]) + params["b_e1"], 0.0)
    mu = mm(h, params["w_mu"]) + params["b_mu"]
    lv = mm(h, params["w_lv"]) + params["b_lv"]
    z = mu + eps * jnp.exp(0.5 * lv)
    hd = jnp.maximum(mm(z, params["w_d1"]) + params["b_d1"], 0.0)
    xrec = jax.nn.sigmoid(mm(hd, params["w_d2"]) + params["b_d2"])
    return xrec.reshape(B, C, H, W), mu, lv, z


if __name__ == "__main__":
    # Small shapes consistent with the module's image-autoencoder usage.
    B, C, H, W = 2, 4, 16, 16
    D_IN = C * H * W          # 1024
    D_HIDDEN = 64
    D_LATENT = 8

    key = jax.random.PRNGKey(0)
    k_x, k_eps, k_p = jax.random.split(key, 3)

    x = jax.random.uniform(k_x, (B, C, H, W), jnp.float32)        # image-like input in [0,1)
    eps = jax.random.normal(k_eps, (B, D_LATENT), jnp.float32)    # torch.randn equivalent
    params = init_params(k_p, D_IN, D_HIDDEN, D_LATENT)

    # One-time weight prep (cached alongside the params; not on the per-call path).
    prepped = jax.block_until_ready(prepare_params(params))

    x_rec, mu, logvar, noisy_mu = vae_forward(x, eps, prepped)
    jax.block_until_ready((x_rec, mu, logvar, noisy_mu))

    # Sanity check against a pure-JAX reference using the same bf16 matmul precision.
    # Tolerance covers bf16 accumulation-order differences + the bf16 x_rec store.
    x_rec_r, mu_r, lv_r, z_r = vae_forward_ref(x, eps, params)
    assert jnp.allclose(x_rec.astype(jnp.float32), x_rec_r, atol=2e-2, rtol=2e-2), "x_rec mismatch"
    assert jnp.allclose(mu, mu_r, atol=2e-2, rtol=2e-2), "mu mismatch"
    assert jnp.allclose(logvar, lv_r, atol=2e-2, rtol=2e-2), "logvar mismatch"
    assert jnp.allclose(noisy_mu, z_r, atol=2e-2, rtol=2e-2), "z mismatch"

    print("KERNEL_OK")
</pallas_src>

<mosaic_0001>
module attributes {stable_mosaic.version = 11 : i64} {
  func.func @_vae_kernel(%arg0: i32, %arg1: memref<8x1024xbf16, #tpu.memory_space<vmem>>, %arg2: memref<8x8xf32, #tpu.memory_space<vmem>>, %arg3: memref<1024x64xbf16, #tpu.memory_space<vmem>>, %arg4: memref<1x64xf32, #tpu.memory_space<vmem>>, %arg5: memref<64x16xbf16, #tpu.memory_space<vmem>>, %arg6: memref<1x16xf32, #tpu.memory_space<vmem>>, %arg7: memref<8x64xbf16, #tpu.memory_space<vmem>>, %arg8: memref<1x64xf32, #tpu.memory_space<vmem>>, %arg9: memref<64x1024xbf16, #tpu.memory_space<vmem>>, %arg10: memref<1x1024xf32, #tpu.memory_space<vmem>>, %arg11: memref<8x1024xbf16, #tpu.memory_space<vmem>>, %arg12: memref<8x24xf32, #tpu.memory_space<vmem>>) attributes {dimension_semantics = [#tpu.dimension_semantics<parallel>], iteration_bounds = array<i64: 2>, scalar_prefetch = 0 : i64, scratch_operands = 0 : i64, tpu.core_type = #tpu.core_type<tc>, window_params = [{transform_indices = @transform_0, window_bounds = array<i64: 8, 1024>}, {transform_indices = @transform_1, window_bounds = array<i64: 8, 8>}, {pipeline_mode = #tpu.pipeline_mode<synchronous>, transform_indices = @transform_2, window_bounds = array<i64: 1024, 64>}, {pipeline_mode = #tpu.pipeline_mode<synchronous>, transform_indices = @transform_3, window_bounds = array<i64: 1, 64>}, {pipeline_mode = #tpu.pipeline_mode<synchronous>, transform_indices = @transform_4, window_bounds = array<i64: 64, 16>}, {pipeline_mode = #tpu.pipeline_mode<synchronous>, transform_indices = @transform_5, window_bounds = array<i64: 1, 16>}, {pipeline_mode = #tpu.pipeline_mode<synchronous>, transform_indices = @transform_6, window_bounds = array<i64: 8, 64>}, {pipeline_mode = #tpu.pipeline_mode<synchronous>, transform_indices = @transform_7, window_bounds = array<i64: 1, 64>}, {pipeline_mode = #tpu.pipeline_mode<synchronous>, transform_indices = @transform_8, window_bounds = array<i64: 64, 1024>}, {pipeline_mode = #tpu.pipeline_mode<synchronous>, transform_indices = @transform_9, window_bounds = array<i64: 1, 1024>}, {transform_indices = @transform_10, window_bounds = array<i64: 8, 1024>}, {transform_indices = @transform_11, window_bounds = array<i64: 8, 24>}]} {
    %c0 = arith.constant 0 : index
    %c0_0 = arith.constant 0 : index
    %0 = vector.load %arg1[%c0, %c0_0] : memref<8x1024xbf16, #tpu.memory_space<vmem>>, vector<8x1024xbf16>
    %c0_1 = arith.constant 0 : index
    %c0_2 = arith.constant 0 : index
    %1 = vector.load %arg2[%c0_1, %c0_2] : memref<8x8xf32, #tpu.memory_space<vmem>>, vector<8x8xf32>
    %c0_3 = arith.constant 0 : index
    %c0_4 = arith.constant 0 : index
    %2 = vector.load %arg3[%c0_3, %c0_4] : memref<1024x64xbf16, #tpu.memory_space<vmem>>, vector<1024x64xbf16>
    %cst = arith.constant dense<0.000000e+00> : vector<8x64xf32>
    %3 = tpu.matmul %0, %2, %cst {dimension_numbers = #tpu.dot_dimension_numbers<[1], [0], [0], [1], [0, 0, 1, 1], [], []>} : vector<8x1024xbf16>, vector<1024x64xbf16>, vector<8x64xf32> -> vector<8x64xf32>
    %c0_5 = arith.constant 0 : index
    %c0_6 = arith.constant 0 : index
    %4 = vector.load %arg4[%c0_5, %c0_6] : memref<1x64xf32, #tpu.memory_space<vmem>>, vector<1x64xf32>
    %5 = vector.broadcast %4 : vector<1x64xf32> to vector<8x64xf32>
    %6 = arith.addf %3, %5 : vector<8x64xf32>
    %cst_7 = arith.constant 0.000000e+00 : f32
    %7 = vector.broadcast %cst_7 : f32 to vector<8x64xf32>
    %8 = arith.maximumf %6, %7 : vector<8x64xf32>
    %9 = arith.truncf %8 : vector<8x64xf32> to vector<8x64xbf16>
    %c0_8 = arith.constant 0 : index
    %c0_9 = arith.constant 0 : index
    %10 = vector.load %arg5[%c0_8, %c0_9] : memref<64x16xbf16, #tpu.memory_space<vmem>>, vector<64x16xbf16>
    %cst_10 = arith.constant dense<0.000000e+00> : vector<8x16xf32>
    %11 = tpu.matmul %9, %10, %cst_10 {dimension_numbers = #tpu.dot_dimension_numbers<[1], [0], [0], [1], [0, 0, 1, 1], [], []>} : vector<8x64xbf16>, vector<64x16xbf16>, vector<8x16xf32> -> vector<8x16xf32>
    %c0_11 = arith.constant 0 : index
    %c0_12 = arith.constant 0 : index
    %12 = vector.load %arg6[%c0_11, %c0_12] : memref<1x16xf32, #tpu.memory_space<vmem>>, vector<1x16xf32>
    %13 = vector.broadcast %12 : vector<1x16xf32> to vector<8x16xf32>
    %14 = arith.addf %11, %13 : vector<8x16xf32>
    %15 = vector.extract_strided_slice %14 {offsets = [0, 0], sizes = [8, 8], strides = [1, 1]} : vector<8x16xf32> to vector<8x8xf32>
    %16 = vector.extract_strided_slice %14 {offsets = [0, 8], sizes = [8, 8], strides = [1, 1]} : vector<8x16xf32> to vector<8x8xf32>
    %cst_13 = arith.constant 5.000000e-01 : f32
    %17 = vector.broadcast %cst_13 : f32 to vector<8x8xf32>
    %18 = arith.mulf %17, %16 : vector<8x8xf32>
    %19 = math.exp %18 : vector<8x8xf32>
    %20 = arith.mulf %1, %19 : vector<8x8xf32>
    %21 = arith.addf %15, %20 : vector<8x8xf32>
    %22 = arith.truncf %21 : vector<8x8xf32> to vector<8x8xbf16>
    %c0_14 = arith.constant 0 : index
    %c0_15 = arith.constant 0 : index
    %23 = vector.load %arg7[%c0_14, %c0_15] : memref<8x64xbf16, #tpu.memory_space<vmem>>, vector<8x64xbf16>
    %cst_16 = arith.constant dense<0.000000e+00> : vector<8x64xf32>
    %24 = tpu.matmul %22, %23, %cst_16 {dimension_numbers = #tpu.dot_dimension_numbers<[1], [0], [0], [1], [0, 0, 1, 1], [], []>} : vector<8x8xbf16>, vector<8x64xbf16>, vector<8x64xf32> -> vector<8x64xf32>
    %c0_17 = arith.constant 0 : index
    %c0_18 = arith.constant 0 : index
    %25 = vector.load %arg8[%c0_17, %c0_18] : memref<1x64xf32, #tpu.memory_space<vmem>>, vector<1x64xf32>
    %26 = vector.broadcast %25 : vector<1x64xf32> to vector<8x64xf32>
    %27 = arith.addf %24, %26 : vector<8x64xf32>
    %cst_19 = arith.constant 0.000000e+00 : f32
    %28 = vector.broadcast %cst_19 : f32 to vector<8x64xf32>
    %29 = arith.maximumf %27, %28 : vector<8x64xf32>
    %30 = arith.truncf %29 : vector<8x64xf32> to vector<8x64xbf16>
    %c0_20 = arith.constant 0 : index
    %c0_21 = arith.constant 0 : index
    %31 = vector.load %arg9[%c0_20, %c0_21] : memref<64x1024xbf16, #tpu.memory_space<vmem>>, vector<64x1024xbf16>
    %cst_22 = arith.constant dense<0.000000e+00> : vector<8x1024xf32>
    %32 = tpu.matmul %30, %31, %cst_22 {dimension_numbers = #tpu.dot_dimension_numbers<[1], [0], [0], [1], [0, 0, 1, 1], [], []>} : vector<8x64xbf16>, vector<64x1024xbf16>, vector<8x1024xf32> -> vector<8x1024xf32>
    %c0_23 = arith.constant 0 : index
    %c0_24 = arith.constant 0 : index
    %33 = vector.load %arg10[%c0_23, %c0_24] : memref<1x1024xf32, #tpu.memory_space<vmem>>, vector<1x1024xf32>
    %34 = vector.broadcast %33 : vector<1x1024xf32> to vector<8x1024xf32>
    %35 = arith.addf %32, %34 : vector<8x1024xf32>
    %cst_25 = arith.constant 5.000000e-01 : f32
    %36 = vector.broadcast %cst_25 : f32 to vector<8x1024xf32>
    %37 = arith.mulf %36, %35 : vector<8x1024xf32>
    %38 = math.tanh %37 : vector<8x1024xf32>
    %cst_26 = arith.constant 5.000000e-01 : f32
    %39 = vector.broadcast %cst_26 : f32 to vector<8x1024xf32>
    %40 = arith.mulf %39, %38 : vector<8x1024xf32>
    %cst_27 = arith.constant 5.000000e-01 : f32
    %41 = vector.broadcast %cst_27 : f32 to vector<8x1024xf32>
    %42 = arith.addf %40, %41 : vector<8x1024xf32>
    %43 = arith.truncf %42 : vector<8x1024xf32> to vector<8x1024xbf16>
    %c0_28 = arith.constant 0 : index
    %c0_29 = arith.constant 0 : index
    %44 = vector.load %arg11[%c0_28, %c0_29] : memref<8x1024xbf16, #tpu.memory_space<vmem>>, vector<8x1024xbf16>
    tpu.vector_store %arg11[%c0_28, %c0_29], %43 {strides = array<i32>} : memref<8x1024xbf16, #tpu.memory_space<vmem>>, vector<8x1024xbf16>,
    %c0_30 = arith.constant 0 : index
    %c0_31 = arith.constant 0 : index
    %45 = vector.load %arg12[%c0_30, %c0_31] : memref<8x24xf32, #tpu.memory_space<vmem>>, vector<8x16xf32>
    tpu.vector_store %arg12[%c0_30, %c0_31], %14 {strides = array<i32>} : memref<8x24xf32, #tpu.memory_space<vmem>>, vector<8x16xf32>,
    %c0_32 = arith.constant 0 : index
    %c16 = arith.constant 16 : index
    %46 = vector.load %arg12[%c0_32, %c16] : memref<8x24xf32, #tpu.memory_space<vmem>>, vector<8x8xf32>
    tpu.vector_store %arg12[%c0_32, %c16], %21 {strides = array<i32>} : memref<8x24xf32, #tpu.memory_space<vmem>>, vector<8x8xf32>,
    return
  }
  func.func @transform_0(%arg0: i32) -> (i32, i32) {
    %c0_i32 = arith.constant 0 : i32
    %c0_i32_0 = arith.constant 0 : i32
    return %arg0, %c0_i32 : i32, i32
  }
  func.func @transform_1(%arg0: i32) -> (i32, i32) {
    %c0_i32 = arith.constant 0 : i32
    %c0_i32_0 = arith.constant 0 : i32
    return %arg0, %c0_i32 : i32, i32
  }
  func.func @transform_2(%arg0: i32) -> (i32, i32) {
    %c0_i32 = arith.constant 0 : i32
    %c0_i32_0 = arith.constant 0 : i32
    %c0_i32_1 = arith.constant 0 : i32
    return %c0_i32, %c0_i32_0 : i32, i32
  }
  func.func @transform_3(%arg0: i32) -> (i32, i32) {
    %c0_i32 = arith.constant 0 : i32
    %c0_i32_0 = arith.constant 0 : i32
    %c0_i32_1 = arith.constant 0 : i32
    return %c0_i32, %c0_i32_0 : i32, i32
  }
  func.func @transform_4(%arg0: i32) -> (i32, i32) {
    %c0_i32 = arith.constant 0 : i32
    %c0_i32_0 = arith.constant 0 : i32
    %c0_i32_1 = arith.constant 0 : i32
    return %c0_i32, %c0_i32_0 : i32, i32
  }
  func.func @transform_5(%arg0: i32) -> (i32, i32) {
    %c0_i32 = arith.constant 0 : i32
    %c0_i32_0 = arith.constant 0 : i32
    %c0_i32_1 = arith.constant 0 : i32
    return %c0_i32, %c0_i32_0 : i32, i32
  }
  func.func @transform_6(%arg0: i32) -> (i32, i32) {
    %c0_i32 = arith.constant 0 : i32
    %c0_i32_0 = arith.constant 0 : i32
    %c0_i32_1 = arith.constant 0 : i32
    return %c0_i32, %c0_i32_0 : i32, i32
  }
  func.func @transform_7(%arg0: i32) -> (i32, i32) {
    %c0_i32 = arith.constant 0 : i32
    %c0_i32_0 = arith.constant 0 : i32
    %c0_i32_1 = arith.constant 0 : i32
    return %c0_i32, %c0_i32_0 : i32, i32
  }
  func.func @transform_8(%arg0: i32) -> (i32, i32) {
    %c0_i32 = arith.constant 0 : i32
    %c0_i32_0 = arith.constant 0 : i32
    %c0_i32_1 = arith.constant 0 : i32
    return %c0_i32, %c0_i32_0 : i32, i32
  }
  func.func @transform_9(%arg0: i32) -> (i32, i32) {
    %c0_i32 = arith.constant 0 : i32
    %c0_i32_0 = arith.constant 0 : i32
    %c0_i32_1 = arith.constant 0 : i32
    return %c0_i32, %c0_i32_0 : i32, i32
  }
  func.func @transform_10(%arg0: i32) -> (i32, i32) {
    %c0_i32 = arith.constant 0 : i32
    %c0_i32_0 = arith.constant 0 : i32
    return %arg0, %c0_i32 : i32, i32
  }
  func.func @transform_11(%arg0: i32) -> (i32, i32) {
    %c0_i32 = arith.constant 0 : i32
    %c0_i32_0 = arith.constant 0 : i32
    return %arg0, %c0_i32 : i32, i32
  }
}

</mosaic_0001>

<llo_original>
// kernel: tpu_custom_call.1
$region0: #{tpu_custom_call.1}
  #allocation0 [shape = 'u32[]', space=smem, size = 0x4, offset = 0x4, fixed_abs, tag = 'smem constant byte address 0x4 - core index']
  #allocation1 [shape = 'u32[72,128]{1,0:T(1,128)}', space=vmem, size = 0x9000, scoped, tag = 'internal scratch']
  %s0 = inlined_call_operand.vmem [shape: bf16[16,1024], index: 0, kind: input, shape index: {}]
  %s1 = inlined_call_operand.vmem [shape: f32[16,8], index: 1, kind: input, shape index: {}]
  %s2 = inlined_call_operand.vmem [shape: bf16[1024,64], index: 2, kind: input, shape index: {}]
  %s3 = inlined_call_operand.vmem [shape: f32[1,64], index: 3, kind: input, shape index: {}]
  %s4 = inlined_call_operand.vmem [shape: bf16[64,16], index: 4, kind: input, shape index: {}]
  %s5 = inlined_call_operand.vmem [shape: f32[1,16], index: 5, kind: input, shape index: {}]
  %s6 = inlined_call_operand.vmem [shape: bf16[8,64], index: 6, kind: input, shape index: {}]
  %s7 = inlined_call_operand.vmem [shape: f32[1,64], index: 7, kind: input, shape index: {}]
  %s8 = inlined_call_operand.vmem [shape: bf16[64,1024], index: 8, kind: input, shape index: {}]
  %s9 = inlined_call_operand.vmem [shape: f32[1,1024], index: 9, kind: input, shape index: {}]
  %s10 = inlined_call_operand.hbm [shape: bf16[16,1024], index: 10, kind: output, shape index: {0}]
  %s11 = inlined_call_operand.hbm [shape: f32[16,24], index: 11, kind: output, shape index: {1}]
  %12 = xla_tuple %s10, %s11
  %s13 = sld [smem:[#allocation0]]
  $region81: #{tpu_custom_call.1} parent=0
    _
  %s15 = ssub.s32 1, %s13
  %s16 = scalar_select 0, %s15, %s13
  $region1: #{tpu_custom_call.1} parent=0
    #allocation2 [shape = 'u8[32768]{0}', space=vmem, size = 0x8000, scoped, tag = 'output window, operand 0']
    #allocation3 [shape = 's32[2]{0}', space=sflag, size = 0x8, scoped, tag = 'scoped memory for tpu_custom_call.1']
    #allocation4 [shape = 'u8[8192]{0}', space=vmem, size = 0x2000, scoped, tag = 'output window, operand 1']
    #allocation5 [shape = 's32[2]{0}', space=sflag, size = 0x8, scoped, tag = 'scoped memory for tpu_custom_call.1']
    %17 = vsyncpa [#allocation3], 0
    %s18 = scalar_lea.sflag [#allocation3], 1
    %19 = vsyncpa %s18, 0
    %20 = vsyncpa [#allocation5], 0
    %s21 = scalar_lea.sflag [#allocation5], 1
    %22 = vsyncpa %s21, 0
    loop: start=0, step=1, limit=4
    $region2: #{tpu_custom_call.1} parent=1 // loop_pre_header
      _
    $region3: #{tpu_custom_call.1} parent=1 // loop_header
      %s24 = sphi 0, %s28
      %p25 = scmp.ge.s32.totalorder %s24, 4
      %s34 = sphi 0, %s36
      %s37 = sphi 0, %s34
      %s38 = sphi 0, %s37
      %s54 = sphi 0, %s38
      %s60 = sphi 0, %s62
      %s63 = sphi 0, %s60
      %s64 = sphi 0, %s63
      %s80 = sphi 0, %s64
      %s84 = sphi 0, %s84
      %s86 = sphi 0, %s84
      %s87 = sphi 0, %s86
      %s101 = sphi 0, %s87
      %s105 = sphi 0, %s105
      %s107 = sphi 0, %s105
      %s108 = sphi 0, %s107
      %s122 = sphi 0, %s108
      %s126 = sphi 0, %s126
      %s128 = sphi 0, %s126
      %s129 = sphi 0, %s128
      %s143 = sphi 0, %s129
      %s147 = sphi 0, %s147
      %s149 = sphi 0, %s147
      %s150 = sphi 0, %s149
      %s164 = sphi 0, %s150
      %s168 = sphi 0, %s168
      %s170 = sphi 0, %s168
      %s171 = sphi 0, %s170
      %s185 = sphi 0, %s171
      %s189 = sphi 0, %s189
      %s191 = sphi 0, %s189
      %s192 = sphi 0, %s191
      %s206 = sphi 0, %s192
      %s210 = sphi 0, %s210
      %s212 = sphi 0, %s210
      %s213 = sphi 0, %s212
      %s227 = sphi 0, %s213
      %s231 = sphi 0, %s231
      %s233 = sphi 0, %s231
      %s234 = sphi 0, %s233
      %s248 = sphi 0, %s234
      %s254 = sphi 0, %s256
      %s257 = sphi 0, %s254
      %s258 = sphi 0, %s257
      %s274 = sphi 0, %s258
      %s280 = sphi 0, %s282
      %s283 = sphi 0, %s280
      %s284 = sphi 0, %s283
      %s300 = sphi 0, %s284
    $region4: #{tpu_custom_call.1} parent=1 // loop_header_branch
      %27 = sbr.rel (%p25) target = $region8
    $region5: #{tpu_custom_call.1} parent=1 // loop_body
      %s29 = ssub.s32 %s24, 1
      %s30 = ssub.s32 %s24, 2
      %s31 = sadd.s32 %s24, 1
      %s32 = ssub.s32 %s24, %s31
      %p33 = scmp.eq.s32.totalorder %s32, 0
      %s35 = sadd.s32 %s34, 1
      %s36 = scalar_select %p33, %s34, %s35
      %p39 = pneg %p33
      %p40 = scmp.eq.s32.totalorder %s24, 1
      %p41 = por %p39, %p40
      %p42 = scmp.ne.s32.totalorder %s34, %s37
      %p43 = scmp.eq.s32.totalorder %s24, 0
      %p44 = por %p42, %p43
      %p45 = scmp.ne.s32.totalorder %s34, %s37
      %p46 = scmp.eq.s32.totalorder %s29, 1
      %p47 = por %p45, %p46
      %p48 = scmp.ne.s32.totalorder %s37, %s38
      %p49 = scmp.eq.s32.totalorder %s29, 0
      %p50 = por %p48, %p49
      %p51 = scmp.ne.s32.totalorder %s37, %s38
      %p52 = scmp.eq.s32.totalorder %s30, 1
      %p53 = por %p51, %p52
      %p55 = scmp.ne.s32.totalorder %s38, %s54
      %p56 = scmp.eq.s32.totalorder %s30, 0
      %p57 = por %p55, %p56
      %s58 = ssub.s32 %s24, %s31
      %p59 = scmp.eq.s32.totalorder %s58, 0
      %s61 = sadd.s32 %s60, 1
      %s62 = scalar_select %p59, %s60, %s61
      %p65 = pneg %p59
      %p66 = scmp.eq.s32.totalorder %s24, 1
      %p67 = por %p65, %p66
      %p68 = scmp.ne.s32.totalorder %s60, %s63
      %p69 = scmp.eq.s32.totalorder %s24, 0
      %p70 = por %p68, %p69
      %p71 = scmp.ne.s32.totalorder %s60, %s63
      %p72 = scmp.eq.s32.totalorder %s29, 1
      %p73 = por %p71, %p72
      %p74 = scmp.ne.s32.totalorder %s63, %s64
      %p75 = scmp.eq.s32.totalorder %s29, 0
      %p76 = por %p74, %p75
      %p77 = scmp.ne.s32.totalorder %s63, %s64
      %p78 = scmp.eq.s32.totalorder %s30, 1
      %p79 = por %p77, %p78
      %p81 = scmp.ne.s32.totalorder %s64, %s80
      %p82 = scmp.eq.s32.totalorder %s30, 0
      %p83 = por %p81, %p82
      %s85 = sadd.s32 %s84, 1
      %p88 = scmp.eq.s32.totalorder %s24, 1
      %p89 = scmp.ne.s32.totalorder %s84, %s86
      %p90 = scmp.eq.s32.totalorder %s24, 0
      %p91 = por %p89, %p90
      %p92 = scmp.ne.s32.totalorder %s84, %s86
      %p93 = scmp.eq.s32.totalorder %s29, 1
      %p94 = por %p92, %p93
      %p95 = scmp.ne.s32.totalorder %s86, %s87
      %p96 = scmp.eq.s32.totalorder %s29, 0
      %p97 = por %p95, %p96
      %p98 = scmp.ne.s32.totalorder %s86, %s87
      %p99 = scmp.eq.s32.totalorder %s30, 1
      %p100 = por %p98, %p99
      %p102 = scmp.ne.s32.totalorder %s87, %s101
      %p103 = scmp.eq.s32.totalorder %s30, 0
      %p104 = por %p102, %p103
      %s106 = sadd.s32 %s105, 1
      %p109 = scmp.eq.s32.totalorder %s24, 1
      %p110 = scmp.ne.s32.totalorder %s105, %s107
      %p111 = scmp.eq.s32.totalorder %s24, 0
      %p112 = por %p110, %p111
      %p113 = scmp.ne.s32.totalorder %s105, %s107
      %p114 = scmp.eq.s32.totalorder %s29, 1
      %p115 = por %p113, %p114
      %p116 = scmp.ne.s32.totalorder %s107, %s108
      %p117 = scmp.eq.s32.totalorder %s29, 0
      %p118 = por %p116, %p117
      %p119 = scmp.ne.s32.totalorder %s107, %s108
      %p120 = scmp.eq.s32.totalorder %s30, 1
      %p121 = por %p119, %p120
      %p123 = scmp.ne.s32.totalorder %s108, %s122
      %p124 = scmp.eq.s32.totalorder %s30, 0
      %p125 = por %p123, %p124
      %s127 = sadd.s32 %s126, 1
      %p130 = scmp.eq.s32.totalorder %s24, 1
      %p131 = scmp.ne.s32.totalorder %s126, %s128
      %p132 = scmp.eq.s32.totalorder %s24, 0
      %p133 = por %p131, %p132
      %p134 = scmp.ne.s32.totalorder %s126, %s128
      %p135 = scmp.eq.s32.totalorder %s29, 1
      %p136 = por %p134, %p135
      %p137 = scmp.ne.s32.totalorder %s128, %s129
      %p138 = scmp.eq.s32.totalorder %s29, 0
      %p139 = por %p137, %p138
      %p140 = scmp.ne.s32.totalorder %s128, %s129
      %p141 = scmp.eq.s32.totalorder %s30, 1
      %p142 = por %p140, %p141
      %p144 = scmp.ne.s32.totalorder %s129, %s143
      %p145 = scmp.eq.s32.totalorder %s30, 0
      %p146 = por %p144, %p145
      %s148 = sadd.s32 %s147, 1
      %p151 = scmp.eq.s32.totalorder %s24, 1
      %p152 = scmp.ne.s32.totalorder %s147, %s149
      %p153 = scmp.eq.s32.totalorder %s24, 0
      %p154 = por %p152, %p153
      %p155 = scmp.ne.s32.totalorder %s147, %s149
      %p156 = scmp.eq.s32.totalorder %s29, 1
      %p157 = por %p155, %p156
      %p158 = scmp.ne.s32.totalorder %s149, %s150
      %p159 = scmp.eq.s32.totalorder %s29, 0
      %p160 = por %p158, %p159
      %p161 = scmp.ne.s32.totalorder %s149, %s150
      %p162 = scmp.eq.s32.totalorder %s30, 1
      %p163 = por %p161, %p162
      %p165 = scmp.ne.s32.totalorder %s150, %s164
      %p166 = scmp.eq.s32.totalorder %s30, 0
      %p167 = por %p165, %p166
      %s169 = sadd.s32 %s168, 1
      %p172 = scmp.eq.s32.totalorder %s24, 1
      %p173 = scmp.ne.s32.totalorder %s168, %s170
      %p174 = scmp.eq.s32.totalorder %s24, 0
      %p175 = por %p173, %p174
      %p176 = scmp.ne.s32.totalorder %s168, %s170
      %p177 = scmp.eq.s32.totalorder %s29, 1
      %p178 = por %p176, %p177
      %p179 = scmp.ne.s32.totalorder %s170, %s171
      %p180 = scmp.eq.s32.totalorder %s29, 0
      %p181 = por %p179, %p180
      %p182 = scmp.ne.s32.totalorder %s170, %s171
      %p183 = scmp.eq.s32.totalorder %s30, 1
      %p184 = por %p182, %p183
      %p186 = scmp.ne.s32.totalorder %s171, %s185
      %p187 = scmp.eq.s32.totalorder %s30, 0
      %p188 = por %p186, %p187
      %s190 = sadd.s32 %s189, 1
      %p193 = scmp.eq.s32.totalorder %s24, 1
      %p194 = scmp.ne.s32.totalorder %s189, %s191
      %p195 = scmp.eq.s32.totalorder %s24, 0
      %p196 = por %p194, %p195
      %p197 = scmp.ne.s32.totalorder %s189, %s191
      %p198 = scmp.eq.s32.totalorder %s29, 1
      %p199 = por %p197, %p198
      %p200 = scmp.ne.s32.totalorder %s191, %s192
      %p201 = scmp.eq.s32.totalorder %s29, 0
      %p202 = por %p200, %p201
      %p203 = scmp.ne.s32.totalorder %s191, %s192
      %p204 = scmp.eq.s32.totalorder %s30, 1
      %p205 = por %p203, %p204
      %p207 = scmp.ne.s32.totalorder %s192, %s206
      %p208 = scmp.eq.s32.totalorder %s30, 0
      %p209 = por %p207, %p208
      %s211 = sadd.s32 %s210, 1
      %p214 = scmp.eq.s32.totalorder %s24, 1
      %p215 = scmp.ne.s32.totalorder %s210, %s212
      %p216 = scmp.eq.s32.totalorder %s24, 0
      %p217 = por %p215, %p216
      %p218 = scmp.ne.s32.totalorder %s210, %s212
      %p219 = scmp.eq.s32.totalorder %s29, 1
      %p220 = por %p218, %p219
      %p221 = scmp.ne.s32.totalorder %s212, %s213
      %p222 = scmp.eq.s32.totalorder %s29, 0
      %p223 = por %p221, %p222
      %p224 = scmp.ne.s32.totalorder %s212, %s213
      %p225 = scmp.eq.s32.totalorder %s30, 1
      %p226 = por %p224, %p225
      %p228 = scmp.ne.s32.totalorder %s213, %s227
      %p229 = scmp.eq.s32.totalorder %s30, 0
      %p230 = por %p228, %p229
      %s232 = sadd.s32 %s231, 1
      %p235 = scmp.eq.s32.totalorder %s24, 1
      %p236 = scmp.ne.s32.totalorder %s231, %s233
      %p237 = scmp.eq.s32.totalorder %s24, 0
      %p238 = por %p236, %p237
      %p239 = scmp.ne.s32.totalorder %s231, %s233
      %p240 = scmp.eq.s32.totalorder %s29, 1
      %p241 = por %p239, %p240
      %p242 = scmp.ne.s32.totalorder %s233, %s234
      %p243 = scmp.eq.s32.totalorder %s29, 0
      %p244 = por %p242, %p243
      %p245 = scmp.ne.s32.totalorder %s233, %s234
      %p246 = scmp.eq.s32.totalorder %s30, 1
      %p247 = por %p245, %p246
      %p249 = scmp.ne.s32.totalorder %s234, %s248
      %p250 = scmp.eq.s32.totalorder %s30, 0
      %p251 = por %p249, %p250
      %s252 = ssub.s32 %s24, %s31
      %p253 = scmp.eq.s32.totalorder %s252, 0
      %s255 = sadd.s32 %s254, 1
      %s256 = scalar_select %p253, %s254, %s255
      %p259 = pneg %p253
      %p260 = scmp.eq.s32.totalorder %s24, 1
      %p261 = por %p259, %p260
      %p262 = scmp.ne.s32.totalorder %s254, %s257
      %p263 = scmp.eq.s32.totalorder %s24, 0
      %p264 = por %p262, %p263
      %p265 = scmp.ne.s32.totalorder %s254, %s257
      %p266 = scmp.eq.s32.totalorder %s29, 1
      %p267 = por %p265, %p266
      %p268 = scmp.ne.s32.totalorder %s257, %s258
      %p269 = scmp.eq.s32.totalorder %s29, 0
      %p270 = por %p268, %p269
      %p271 = scmp.ne.s32.totalorder %s257, %s258
      %p272 = scmp.eq.s32.totalorder %s30, 1
      %p273 = por %p271, %p272
      %p275 = scmp.ne.s32.totalorder %s258, %s274
      %p276 = scmp.eq.s32.totalorder %s30, 0
      %p277 = por %p275, %p276
      %s278 = ssub.s32 %s24, %s31
      %p279 = scmp.eq.s32.totalorder %s278, 0
      %s281 = sadd.s32 %s280, 1
      %s282 = scalar_select %p279, %s280, %s281
      %p285 = pneg %p279
      %p286 = scmp.eq.s32.totalorder %s24, 1
      %p287 = por %p285, %p286
      %p288 = scmp.ne.s32.totalorder %s280, %s283
      %p289 = scmp.eq.s32.totalorder %s24, 0
      %p290 = por %p288, %p289
      %p291 = scmp.ne.s32.totalorder %s280, %s283
      %p292 = scmp.eq.s32.totalorder %s29, 1
      %p293 = por %p291, %p292
      %p294 = scmp.ne.s32.totalorder %s283, %s284
      %p295 = scmp.eq.s32.totalorder %s29, 0
      %p296 = por %p294, %p295
      %p297 = scmp.ne.s32.totalorder %s283, %s284
      %p298 = scmp.eq.s32.totalorder %s30, 1
      %p299 = por %p297, %p298
      %p301 = scmp.ne.s32.totalorder %s284, %s300
      %p302 = scmp.eq.s32.totalorder %s30, 0
      %p303 = por %p301, %p302
      %p304 = scmp.le.s32.totalorder 1, %s24
      %p305 = scmp.lt.s32.totalorder %s24, 3
      %p306 = pnand %p304, %p305
      %p307 = pneg %p306
      // Predicated region
      $region9: #{tpu_custom_call.1} parent=5 // pred_check
        _
      $region10: #{tpu_custom_call.1} parent=5 // pred_check_branch
        %309 = sbr.rel (%p306) target = $region12
      $region11: #{tpu_custom_call.1} parent=5 // pred_region
        %s310 = ssub.s32 %s24, 1
        // Predicated region
        $region13: #{tpu_custom_call.1} parent=11 // pred_check
          %p311 = pneg %p97
        $region14: #{tpu_custom_call.1} parent=11 // pred_check_branch
          %313 = sbr.rel (%p311) target = $region16
        $region15: #{tpu_custom_call.1} parent=11 // pred_region
          _
        $region16: #{tpu_custom_call.1} parent=11 // pred_fallthru
          _
        // Predicated region
        $region17: #{tpu_custom_call.1} parent=11 // pred_check
          %p314 = pneg %p118
        $region18: #{tpu_custom_call.1} parent=11 // pred_check_branch
          %316 = sbr.rel (%p314) target = $region20
        $region19: #{tpu_custom_call.1} parent=11 // pred_region
          _
        $region20: #{tpu_custom_call.1} parent=11 // pred_fallthru
          _
        // Predicated region
        $region21: #{tpu_custom_call.1} parent=11 // pred_check
          %p317 = pneg %p139
        $region22: #{tpu_custom_call.1} parent=11 // pred_check_branch
          %319 = sbr.rel (%p317) target = $region24
        $region23: #{tpu_custom_call.1} parent=11 // pred_region
          _
        $region24: #{tpu_custom_call.1} parent=11 // pred_fallthru
          _
        // Predicated region
        $region25: #{tpu_custom_call.1} parent=11 // pred_check
          %p320 = pneg %p160
        $region26: #{tpu_custom_call.1} parent=11 // pred_check_branch
          %322 = sbr.rel (%p320) target = $region28
        $region27: #{tpu_custom_call.1} parent=11 // pred_region
          _
        $region28: #{tpu_custom_call.1} parent=11 // pred_fallthru
          _
        // Predicated region
        $region29: #{tpu_custom_call.1} parent=11 // pred_check
          %p323 = pneg %p181
        $region30: #{tpu_custom_call.1} parent=11 // pred_check_branch
          %325 = sbr.rel (%p323) target = $region32
        $region31: #{tpu_custom_call.1} parent=11 // pred_region
          _
        $region32: #{tpu_custom_call.1} parent=11 // pred_fallthru
          _
        // Predicated region
        $region33: #{tpu_custom_call.1} parent=11 // pred_check
          %p326 = pneg %p202
        $region34: #{tpu_custom_call.1} parent=11 // pred_check_branch
          %328 = sbr.rel (%p326) target = $region36
        $region35: #{tpu_custom_call.1} parent=11 // pred_region
          _
        $region36: #{tpu_custom_call.1} parent=11 // pred_fallthru
          _
        // Predicated region
        $region37: #{tpu_custom_call.1} parent=11 // pred_check
          %p329 = pneg %p223
        $region38: #{tpu_custom_call.1} parent=11 // pred_check_branch
          %331 = sbr.rel (%p329) target = $region40
        $region39: #{tpu_custom_call.1} parent=11 // pred_region
          _
        $region40: #{tpu_custom_call.1} parent=11 // pred_fallthru
          _
        // Predicated region
        $region41: #{tpu_custom_call.1} parent=11 // pred_check
          %p332 = pneg %p244
        $region42: #{tpu_custom_call.1} parent=11 // pred_check_branch
          %334 = sbr.rel (%p332) target = $region44
        $region43: #{tpu_custom_call.1} parent=11 // pred_region
          _
        $region44: #{tpu_custom_call.1} parent=11 // pred_fallthru
          _
      $region12: #{tpu_custom_call.1} parent=5 // pred_fallthru
        _
      %p335 = scmp.lt.s32.totalorder %s24, 2
      // Predicated region
      $region45: #{tpu_custom_call.1} parent=5 // pred_check
        %p336 = pneg %p335
      $region46: #{tpu_custom_call.1} parent=5 // pred_check_branch
        %338 = sbr.rel (%p336) target = $region48
      $region47: #{tpu_custom_call.1} parent=5 // pred_region
        // Predicated region
        $region49: #{tpu_custom_call.1} parent=47 // pred_check
          %p339 = pneg %p44
        $region50: #{tpu_custom_call.1} parent=47 // pred_check_branch
          %341 = sbr.rel (%p339) target = $region52
        $region51: #{tpu_custom_call.1} parent=47 // pred_region
          %p342 = scmp.lt.s32.totalorder %s24, 1
          %s343 = scalar_select %p342, %s24, 1
          %s344 = smul.addr %s343, 8
          %s345 = smul.addr %s344, 4
          %s346 = scalar_lea.vmem %s0, %s345
        $region52: #{tpu_custom_call.1} parent=47 // pred_fallthru
          _
        // Predicated region
        $region53: #{tpu_custom_call.1} parent=47 // pred_check
          %p347 = pneg %p70
        $region54: #{tpu_custom_call.1} parent=47 // pred_check_branch
          %349 = sbr.rel (%p347) target = $region56
        $region55: #{tpu_custom_call.1} parent=47 // pred_region
          %p350 = scmp.lt.s32.totalorder %s24, 1
          %s351 = scalar_select %p350, %s24, 1
          %s352 = smul.addr %s351, 8
          %s353 = scalar_lea.vmem %s1, %s352
        $region56: #{tpu_custom_call.1} parent=47 // pred_fallthru
          _
      $region48: #{tpu_custom_call.1} parent=5 // pred_fallthru
        _
      %p354 = scmp.le.s32.totalorder 1, %s24
      %p355 = scmp.lt.s32.totalorder %s24, 3
      %p356 = pnand %p354, %p355
      %p357 = pneg %p356
      // Predicated region
      $region57: #{tpu_custom_call.1} parent=5 // pred_check
        _
      $region58: #{tpu_custom_call.1} parent=5 // pred_check_branch
        %359 = sbr.rel (%p356) target = $region60
      $region59: #{tpu_custom_call.1} parent=5 // pred_region
        %s360 = ssub.s32 %s24, 1
        %p361 = scmp.lt.s32.totalorder %s29, 1
        %s362 = scalar_select %p361, %s29, 1
        %s363 = smul.addr %s362, 8
        %s364 = smul.addr %s363, 4
        %s365 = scalar_lea.vmem %s0, %s364
        %p366 = pneg %p50
        %p367 = pneg %p47
        %p368 = scmp.lt.s32.totalorder %s29, 1
        %s369 = scalar_select %p368, %s29, 1
        %s370 = smul.addr %s369, 8
        %s371 = scalar_lea.vmem %s1, %s370
        %p372 = pneg %p76
        %p373 = pneg %p73
        %p374 = pneg %p97
        %p375 = pneg %p94
        %p376 = pneg %p118
        %p377 = pneg %p115
        %p378 = pneg %p139
        %p379 = pneg %p136
        %p380 = pneg %p160
        %p381 = pneg %p157
        %p382 = pneg %p181
        %p383 = pneg %p178
        %p384 = pneg %p202
        %p385 = pneg %p199
        %p386 = pneg %p223
        %p387 = pneg %p220
        %p388 = pneg %p244
        %p389 = pneg %p241
        %p390 = pneg %p270
        %p391 = pneg %p267
        %s392 = sand.u32 %s257, 1
        %s393 = scalar_lea.sflag [#allocation3], %s392
        %s394 = sand.u32 %s257, 1
        %s395 = smul.addr %s394, 32
        %s396 = scalar_lea.vmem [#allocation2], %s395
        %p397 = pneg %p296
        %p398 = pneg %p293
        %s399 = sand.u32 %s283, 1
        %s400 = scalar_lea.sflag [#allocation5], %s399
        %s401 = sand.u32 %s283, 1
        %s402 = smul.addr %s401, 8
        %s403 = scalar_lea.vmem [#allocation4], %s402
        %p404 = scmp.lt.s32.totalorder %s29, 1
        %s405 = scalar_select %p404, %s29, 1
        %s406 = smul.addr %s405, 8
        %s407 = smul.addr %s406, 4
        %s408 = scalar_lea.vmem %s0, %s407
        %p409 = scmp.lt.s32.totalorder %s29, 1
        %s410 = scalar_select %p409, %s29, 1
        %s411 = smul.addr %s410, 8
        %s412 = scalar_lea.vmem %s1, %s411
        %v414 = vld [vmem:[%s408] sm:$0xff]
        %v415 = vld [vmem:[%s408 + $0x8] sm:$0xff]
        %v416 = vld [vmem:[%s408 + $0x10] sm:$0xff]
        %v417 = vld [vmem:[%s408 + $0x18] sm:$0xff]
        %v418 = vld [vmem:[%s412] sm:$0xff]
        %v419 = vld [vmem:[%s2] sm:$0xf]
        %v420 = vld [vmem:[%s2 + $0x4] sm:$0xf]
        %v421 = vld [vmem:[%s2 + $0x8] sm:$0xf]
        %v422 = vld [vmem:[%s2 + $0xc] sm:$0xf]
        %v423 = vld [vmem:[%s2 + $0x10] sm:$0xf]
        %v424 = vld [vmem:[%s2 + $0x14] sm:$0xf]
        %v425 = vld [vmem:[%s2 + $0x18] sm:$0xf]
        %v426 = vld [vmem:[%s2 + $0x1c] sm:$0xf]
        %v427 = vld [vmem:[%s2 + $0x20] sm:$0xf]
        %v428 = vld [vmem:[%s2 + $0x24] sm:$0xf]
        %v429 = vld [vmem:[%s2 + $0x28] sm:$0xf]
        %v430 = vld [vmem:[%s2 + $0x2c] sm:$0xf]
        %v431 = vld [vmem:[%s2 + $0x30] sm:$0xf]
        %v432 = vld [vmem:[%s2 + $0x34] sm:$0xf]
        %v433 = vld [vmem:[%s2 + $0x38] sm:$0xf]
        %v434 = vld [vmem:[%s2 + $0x3c] sm:$0xf]
        %v435 = vld [vmem:[%s2 + $0x40] sm:$0xf]
        %v436 = vld [vmem:[%s2 + $0x44] sm:$0xf]
        %v437 = vld [vmem:[%s2 + $0x48] sm:$0xf]
        %v438 = vld [vmem:[%s2 + $0x4c] sm:$0xf]
        %v439 = vld [vmem:[%s2 + $0x50] sm:$0xf]
        %v440 = vld [vmem:[%s2 + $0x54] sm:$0xf]
        %v441 = vld [vmem:[%s2 + $0x58] sm:$0xf]
        %v442 = vld [vmem:[%s2 + $0x5c] sm:$0xf]
        %v443 = vld [vmem:[%s2 + $0x60] sm:$0xf]
        %v444 = vld [vmem:[%s2 + $0x64] sm:$0xf]
        %v445 = vld [vmem:[%s2 + $0x68] sm:$0xf]
        %v446 = vld [vmem:[%s2 + $0x6c] sm:$0xf]
        %v447 = vld [vmem:[%s2 + $0x70] sm:$0xf]
        %v448 = vld [vmem:[%s2 + $0x74] sm:$0xf]
        %v449 = vld [vmem:[%s2 + $0x78] sm:$0xf]
        %v450 = vld [vmem:[%s2 + $0x7c] sm:$0xf]
        %v451 = vld [vmem:[%s2 + $0x80] sm:$0xf]
        %v452 = vld [vmem:[%s2 + $0x84] sm:$0xf]
        %v453 = vld [vmem:[%s2 + $0x88] sm:$0xf]
        %v454 = vld [vmem:[%s2 + $0x8c] sm:$0xf]
        %v455 = vld [vmem:[%s2 + $0x90] sm:$0xf]
        %v456 = vld [vmem:[%s2 + $0x94] sm:$0xf]
        %v457 = vld [vmem:[%s2 + $0x98] sm:$0xf]
        %v458 = vld [vmem:[%s2 + $0x9c] sm:$0xf]
        %v459 = vld [vmem:[%s2 + $0xa0] sm:$0xf]
        %v460 = vld [vmem:[%s2 + $0xa4] sm:$0xf]
        %v461 = vld [vmem:[%s2 + $0xa8] sm:$0xf]
        %v462 = vld [vmem:[%s2 + $0xac] sm:$0xf]
        %v463 = vld [vmem:[%s2 + $0xb0] sm:$0xf]
        %v464 = vld [vmem:[%s2 + $0xb4] sm:$0xf]
        %v465 = vld [vmem:[%s2 + $0xb8] sm:$0xf]
        %v466 = vld [vmem:[%s2 + $0xbc] sm:$0xf]
        %v467 = vld [vmem:[%s2 + $0xc0] sm:$0xf]
        %v468 = vld [vmem:[%s2 + $0xc4] sm:$0xf]
        %v469 = vld [vmem:[%s2 + $0xc8] sm:$0xf]
        %v470 = vld [vmem:[%s2 + $0xcc] sm:$0xf]
        %v471 = vld [vmem:[%s2 + $0xd0] sm:$0xf]
        %v472 = vld [vmem:[%s2 + $0xd4] sm:$0xf]
        %v473 = vld [vmem:[%s2 + $0xd8] sm:$0xf]
        %v474 = vld [vmem:[%s2 + $0xdc] sm:$0xf]
        %v475 = vld [vmem:[%s2 + $0xe0] sm:$0xf]
        %v476 = vld [vmem:[%s2 + $0xe4] sm:$0xf]
        %v477 = vld [vmem:[%s2 + $0xe8] sm:$0xf]
        %v478 = vld [vmem:[%s2 + $0xec] sm:$0xf]
        %v479 = vld [vmem:[%s2 + $0xf0] sm:$0xf]
        %v480 = vld [vmem:[%s2 + $0xf4] sm:$0xf]
        %v481 = vld [vmem:[%s2 + $0xf8] sm:$0xf]
        %v482 = vld [vmem:[%s2 + $0xfc] sm:$0xf]
        %v483 = vld [vmem:[%s2 + $0x100] sm:$0xf]
        %v484 = vld [vmem:[%s2 + $0x104] sm:$0xf]
        %v485 = vld [vmem:[%s2 + $0x108] sm:$0xf]
        %v486 = vld [vmem:[%s2 + $0x10c] sm:$0xf]
        %v487 = vld [vmem:[%s2 + $0x110] sm:$0xf]
        %v488 = vld [vmem:[%s2 + $0x114] sm:$0xf]
        %v489 = vld [vmem:[%s2 + $0x118] sm:$0xf]
        %v490 = vld [vmem:[%s2 + $0x11c] sm:$0xf]
        %v491 = vld [vmem:[%s2 + $0x120] sm:$0xf]
        %v492 = vld [vmem:[%s2 + $0x124] sm:$0xf]
        %v493 = vld [vmem:[%s2 + $0x128] sm:$0xf]
        %v494 = vld [vmem:[%s2 + $0x12c] sm:$0xf]
        %v495 = vld [vmem:[%s2 + $0x130] sm:$0xf]
        %v496 = vld [vmem:[%s2 + $0x134] sm:$0xf]
        %v497 = vld [vmem:[%s2 + $0x138] sm:$0xf]
        %v498 = vld [vmem:[%s2 + $0x13c] sm:$0xf]
        %v499 = vld [vmem:[%s2 + $0x140] sm:$0xf]
        %v500 = vld [vmem:[%s2 + $0x144] sm:$0xf]
        %v501 = vld [vmem:[%s2 + $0x148] sm:$0xf]
        %v502 = vld [vmem:[%s2 + $0x14c] sm:$0xf]
        %v503 = vld [vmem:[%s2 + $0x150] sm:$0xf]
        %v504 = vld [vmem:[%s2 + $0x154] sm:$0xf]
        %v505 = vld [vmem:[%s2 + $0x158] sm:$0xf]
        %v506 = vld [vmem:[%s2 + $0x15c] sm:$0xf]
        %v507 = vld [vmem:[%s2 + $0x160] sm:$0xf]
        %v508 = vld [vmem:[%s2 + $0x164] sm:$0xf]
        %v509 = vld [vmem:[%s2 + $0x168] sm:$0xf]
        %v510 = vld [vmem:[%s2 + $0x16c] sm:$0xf]
        %v511 = vld [vmem:[%s2 + $0x170] sm:$0xf]
        %v512 = vld [vmem:[%s2 + $0x174] sm:$0xf]
        %v513 = vld [vmem:[%s2 + $0x178] sm:$0xf]
        %v514 = vld [vmem:[%s2 + $0x17c] sm:$0xf]
        %v515 = vld [vmem:[%s2 + $0x180] sm:$0xf]
        %v516 = vld [vmem:[%s2 + $0x184] sm:$0xf]
        %v517 = vld [vmem:[%s2 + $0x188] sm:$0xf]
        %v518 = vld [vmem:[%s2 + $0x18c] sm:$0xf]
        %v519 = vld [vmem:[%s2 + $0x190] sm:$0xf]
        %v520 = vld [vmem:[%s2 + $0x194] sm:$0xf]
        %v521 = vld [vmem:[%s2 + $0x198] sm:$0xf]
        %v522 = vld [vmem:[%s2 + $0x19c] sm:$0xf]
        %v523 = vld [vmem:[%s2 + $0x1a0] sm:$0xf]
        %v524 = vld [vmem:[%s2 + $0x1a4] sm:$0xf]
        %v525 = vld [vmem:[%s2 + $0x1a8] sm:$0xf]
        %v526 = vld [vmem:[%s2 + $0x1ac] sm:$0xf]
        %v527 = vld [vmem:[%s2 + $0x1b0] sm:$0xf]
        %v528 = vld [vmem:[%s2 + $0x1b4] sm:$0xf]
        %v529 = vld [vmem:[%s2 + $0x1b8] sm:$0xf]
        %v530 = vld [vmem:[%s2 + $0x1bc] sm:$0xf]
        %v531 = vld [vmem:[%s2 + $0x1c0] sm:$0xf]
        %v532 = vld [vmem:[%s2 + $0x1c4] sm:$0xf]
        %v533 = vld [vmem:[%s2 + $0x1c8] sm:$0xf]
        %v534 = vld [vmem:[%s2 + $0x1cc] sm:$0xf]
        %v535 = vld [vmem:[%s2 + $0x1d0] sm:$0xf]
        %v536 = vld [vmem:[%s2 + $0x1d4] sm:$0xf]
        %v537 = vld [vmem:[%s2 + $0x1d8] sm:$0xf]
        %v538 = vld [vmem:[%s2 + $0x1dc] sm:$0xf]
        %v539 = vld [vmem:[%s2 + $0x1e0] sm:$0xf]
        %v540 = vld [vmem:[%s2 + $0x1e4] sm:$0xf]
        %v541 = vld [vmem:[%s2 + $0x1e8] sm:$0xf]
        %v542 = vld [vmem:[%s2 + $0x1ec] sm:$0xf]
        %v543 = vld [vmem:[%s2 + $0x1f0] sm:$0xf]
        %v544 = vld [vmem:[%s2 + $0x1f4] sm:$0xf]
        %v545 = vld [vmem:[%s2 + $0x1f8] sm:$0xf]
        %v546 = vld [vmem:[%s2 + $0x1fc] sm:$0xf]
        %v547 = vld [vmem:[%s3] sm:$0x1]
        %v549 = vperm.slane %v547, 0
        %v555 = vunpack.c.l.b16 %v414
        %v556 = vunpack.c.h.b16 %v414
        %v557 = vunpack.c.l.b16 %v415
        %v558 = vunpack.c.h.b16 %v415
        %v559 = vunpack.c.l.b16 %v416
        %v560 = vunpack.c.h.b16 %v416
        %v561 = vunpack.c.l.b16 %v417
        %v562 = vunpack.c.h.b16 %v417
        %v563 = vpack.c.b16 %v555, %v555
        %v564 = vpack.c.b16 %v556, %v556
        %v565 = vpack.c.b16 %v557, %v557
        %v566 = vpack.c.b16 %v558, %v558
        %v567 = vpack.c.b16 %v559, %v559
        %v568 = vpack.c.b16 %v560, %v560
        %v569 = vpack.c.b16 %v561, %v561
        %v570 = vpack.c.b16 %v562, %v562
        %v707 = vunpack.c.l.b16 %v419
        %v708 = vunpack.c.l.b16 %v420
        %v709 = vunpack.c.l.b16 %v421
        %v710 = vunpack.c.l.b16 %v422
        %v711 = vunpack.c.l.b16 %v423
        %v712 = vunpack.c.l.b16 %v424
        %v713 = vunpack.c.l.b16 %v425
        %v714 = vunpack.c.l.b16 %v426
        %v715 = vunpack.c.l.b16 %v427
        %v716 = vunpack.c.l.b16 %v428
        %v717 = vunpack.c.l.b16 %v429
        %v718 = vunpack.c.l.b16 %v430
        %v719 = vunpack.c.l.b16 %v431
        %v720 = vunpack.c.l.b16 %v432
        %v721 = vunpack.c.l.b16 %v433
        %v722 = vunpack.c.l.b16 %v434
        %v723 = vunpack.c.l.b16 %v435
        %v724 = vunpack.c.l.b16 %v436
        %v725 = vunpack.c.l.b16 %v437
        %v726 = vunpack.c.l.b16 %v438
        %v727 = vunpack.c.l.b16 %v439
        %v728 = vunpack.c.l.b16 %v440
        %v729 = vunpack.c.l.b16 %v441
        %v730 = vunpack.c.l.b16 %v442
        %v731 = vunpack.c.l.b16 %v443
        %v732 = vunpack.c.l.b16 %v444
        %v733 = vunpack.c.l.b16 %v445
        %v734 = vunpack.c.l.b16 %v446
        %v735 = vunpack.c.l.b16 %v447
        %v736 = vunpack.c.l.b16 %v448
        %v737 = vunpack.c.l.b16 %v449
        %v738 = vunpack.c.l.b16 %v450
        %v739 = vunpack.c.l.b16 %v451
        %v740 = vunpack.c.l.b16 %v452
        %v741 = vunpack.c.l.b16 %v453
        %v742 = vunpack.c.l.b16 %v454
        %v743 = vunpack.c.l.b16 %v455
        %v744 = vunpack.c.l.b16 %v456
        %v745 = vunpack.c.l.b16 %v457
        %v746 = vunpack.c.l.b16 %v458
        %v747 = vunpack.c.l.b16 %v459
        %v748 = vunpack.c.l.b16 %v460
        %v749 = vunpack.c.l.b16 %v461
        %v750 = vunpack.c.l.b16 %v462
        %v751 = vunpack.c.l.b16 %v463
        %v752 = vunpack.c.l.b16 %v464
        %v753 = vunpack.c.l.b16 %v465
        %v754 = vunpack.c.l.b16 %v466
        %v755 = vunpack.c.l.b16 %v467
        %v756 = vunpack.c.l.b16 %v468
        %v757 = vunpack.c.l.b16 %v469
        %v758 = vunpack.c.l.b16 %v470
        %v759 = vunpack.c.l.b16 %v471
        %v760 = vunpack.c.l.b16 %v472
        %v761 = vunpack.c.l.b16 %v473
        %v762 = vunpack.c.l.b16 %v474
        %v763 = vunpack.c.l.b16 %v475
        %v764 = vunpack.c.l.b16 %v476
        %v765 = vunpack.c.l.b16 %v477
        %v766 = vunpack.c.l.b16 %v478
        %v767 = vunpack.c.l.b16 %v479
        %v768 = vunpack.c.l.b16 %v480
        %v769 = vunpack.c.l.b16 %v481
        %v770 = vunpack.c.l.b16 %v482
        %v771 = vunpack.c.l.b16 %v483
        %v772 = vunpack.c.l.b16 %v484
        %v773 = vunpack.c.l.b16 %v485
        %v774 = vunpack.c.l.b16 %v486
        %v775 = vunpack.c.l.b16 %v487
        %v776 = vunpack.c.l.b16 %v488
        %v777 = vunpack.c.l.b16 %v489
        %v778 = vunpack.c.l.b16 %v490
        %v779 = vunpack.c.l.b16 %v491
        %v780 = vunpack.c.l.b16 %v492
        %v781 = vunpack.c.l.b16 %v493
        %v782 = vunpack.c.l.b16 %v494
        %v783 = vunpack.c.l.b16 %v495
        %v784 = vunpack.c.l.b16 %v496
        %v785 = vunpack.c.l.b16 %v497
        %v786 = vunpack.c.l.b16 %v498
        %v787 = vunpack.c.l.b16 %v499
        %v788 = vunpack.c.l.b16 %v500
        %v789 = vunpack.c.l.b16 %v501
        %v790 = vunpack.c.l.b16 %v502
        %v791 = vunpack.c.l.b16 %v503
        %v792 = vunpack.c.l.b16 %v504
        %v793 = vunpack.c.l.b16 %v505
        %v794 = vunpack.c.l.b16 %v506
        %v795 = vunpack.c.l.b16 %v507
        %v796 = vunpack.c.l.b16 %v508
        %v797 = vunpack.c.l.b16 %v509
        %v798 = vunpack.c.l.b16 %v510
        %v799 = vunpack.c.l.b16 %v511
        %v800 = vunpack.c.l.b16 %v512
        %v801 = vunpack.c.l.b16 %v513
        %v802 = vunpack.c.l.b16 %v514
        %v803 = vunpack.c.l.b16 %v515
        %v804 = vunpack.c.l.b16 %v516
        %v805 = vunpack.c.l.b16 %v517
        %v806 = vunpack.c.l.b16 %v518
        %v807 = vunpack.c.l.b16 %v519
        %v808 = vunpack.c.l.b16 %v520
        %v809 = vunpack.c.l.b16 %v521
        %v810 = vunpack.c.l.b16 %v522
        %v811 = vunpack.c.l.b16 %v523
        %v812 = vunpack.c.l.b16 %v524
        %v813 = vunpack.c.l.b16 %v525
        %v814 = vunpack.c.l.b16 %v526
        %v815 = vunpack.c.l.b16 %v527
        %v816 = vunpack.c.l.b16 %v528
        %v817 = vunpack.c.l.b16 %v529
        %v818 = vunpack.c.l.b16 %v530
        %v819 = vunpack.c.l.b16 %v531
        %v820 = vunpack.c.l.b16 %v532
        %v821 = vunpack.c.l.b16 %v533
        %v822 = vunpack.c.l.b16 %v534
        %v823 = vunpack.c.l.b16 %v535
        %v824 = vunpack.c.l.b16 %v536
        %v825 = vunpack.c.l.b16 %v537
        %v826 = vunpack.c.l.b16 %v538
        %v827 = vunpack.c.l.b16 %v539
        %v828 = vunpack.c.l.b16 %v540
        %v829 = vunpack.c.l.b16 %v541
        %v830 = vunpack.c.l.b16 %v542
        %v831 = vunpack.c.l.b16 %v543
        %v832 = vunpack.c.l.b16 %v544
        %v833 = vunpack.c.l.b16 %v545
        %v834 = vunpack.c.l.b16 %v546
        %v835 = vpack.c.b16 %v708, %v707
        %v836 = vpack.c.b16 %v710, %v709
        %v837 = vpack.c.b16 %v712, %v711
        %v838 = vpack.c.b16 %v714, %v713
        %v839 = vpack.c.b16 %v716, %v715
        %v840 = vpack.c.b16 %v718, %v717
        %v841 = vpack.c.b16 %v720, %v719
        %v842 = vpack.c.b16 %v722, %v721
        %v843 = vpack.c.b16 %v724, %v723
        %v844 = vpack.c.b16 %v726, %v725
        %v845 = vpack.c.b16 %v728, %v727
        %v846 = vpack.c.b16 %v730, %v729
        %v847 = vpack.c.b16 %v732, %v731
        %v848 = vpack.c.b16 %v734, %v733
        %v849 = vpack.c.b16 %v736, %v735
        %v850 = vpack.c.b16 %v738, %v737
        %v851 = vpack.c.b16 %v740, %v739
        %v852 = vpack.c.b16 %v742, %v741
        %v853 = vpack.c.b16 %v744, %v743
        %v854 = vpack.c.b16 %v746, %v745
        %v855 = vpack.c.b16 %v748, %v747
        %v856 = vpack.c.b16 %v750, %v749
        %v857 = vpack.c.b16 %v752, %v751
        %v858 = vpack.c.b16 %v754, %v753
        %v859 = vpack.c.b16 %v756, %v755
        %v860 = vpack.c.b16 %v758, %v757
        %v861 = vpack.c.b16 %v760, %v759
        %v862 = vpack.c.b16 %v762, %v761
        %v863 = vpack.c.b16 %v764, %v763
        %v864 = vpack.c.b16 %v766, %v765
        %v865 = vpack.c.b16 %v768, %v767
        %v866 = vpack.c.b16 %v770, %v769
        %v867 = vpack.c.b16 %v772, %v771
        %v868 = vpack.c.b16 %v774, %v773
        %v869 = vpack.c.b16 %v776, %v775
        %v870 = vpack.c.b16 %v778, %v777
        %v871 = vpack.c.b16 %v780, %v779
        %v872 = vpack.c.b16 %v782, %v781
        %v873 = vpack.c.b16 %v784, %v783
        %v874 = vpack.c.b16 %v786, %v785
        %v875 = vpack.c.b16 %v788, %v787
        %v876 = vpack.c.b16 %v790, %v789
        %v877 = vpack.c.b16 %v792, %v791
        %v878 = vpack.c.b16 %v794, %v793
        %v879 = vpack.c.b16 %v796, %v795
        %v880 = vpack.c.b16 %v798, %v797
        %v881 = vpack.c.b16 %v800, %v799
        %v882 = vpack.c.b16 %v802, %v801
        %v883 = vpack.c.b16 %v804, %v803
        %v884 = vpack.c.b16 %v806, %v805
        %v885 = vpack.c.b16 %v808, %v807
        %v886 = vpack.c.b16 %v810, %v809
        %v887 = vpack.c.b16 %v812, %v811
        %v888 = vpack.c.b16 %v814, %v813
        %v889 = vpack.c.b16 %v816, %v815
        %v890 = vpack.c.b16 %v818, %v817
        %v891 = vpack.c.b16 %v820, %v819
        %v892 = vpack.c.b16 %v822, %v821
        %v893 = vpack.c.b16 %v824, %v823
        %v894 = vpack.c.b16 %v826, %v825
        %v895 = vpack.c.b16 %v828, %v827
        %v896 = vpack.c.b16 %v830, %v829
        %v897 = vpack.c.b16 %v832, %v831
        %v898 = vpack.c.b16 %v834, %v833
        %963 = vmatpush.bf16.msra.mxu0 %v842
        %964 = vmatpush.bf16.msra.mxu0 %v841
        %965 = vmatpush.bf16.msra.mxu0 %v840
        %966 = vmatpush.bf16.msra.mxu0 %v839
        %967 = vmatpush.bf16.msra.mxu0 %v838
        %968 = vmatpush.bf16.msra.mxu0 %v837
        %969 = vmatpush.bf16.msra.mxu0 %v836
        %970 = vmatpush.bf16.msra.mxu0 %v835
        %971 = vmatmul.bf16.gmra.mxu0 %v563
        %v972 = vpop.f32.mrf.mxu0
        %v973 = vadd.f32 %v549, %v972
        %v974 = vpop.f32.mrf.mxu0
        %975 = vdwg.mxu0
        %976 = vmatpush.bf16.msra.mxu0 %v850
        %977 = vmatpush.bf16.msra.mxu0 %v849
        %978 = vmatpush.bf16.msra.mxu0 %v848
        %979 = vmatpush.bf16.msra.mxu0 %v847
        %980 = vmatpush.bf16.msra.mxu0 %v846
        %981 = vmatpush.bf16.msra.mxu0 %v845
        %982 = vmatpush.bf16.msra.mxu0 %v844
        %983 = vmatpush.bf16.msra.mxu0 %v843
        %984 = vmatmul.bf16.gmra.mxu0 %v564
        %v985 = vpop.f32.mrf.mxu0
        %v986 = vadd.f32 %v973, %v985
        %v987 = vpop.f32.mrf.mxu0
        %988 = vdwg.mxu0
        %989 = vmatpush.bf16.msra.mxu0 %v858
        %990 = vmatpush.bf16.msra.mxu0 %v857
        %991 = vmatpush.bf16.msra.mxu0 %v856
        %992 = vmatpush.bf16.msra.mxu0 %v855
        %993 = vmatpush.bf16.msra.mxu0 %v854
        %994 = vmatpush.bf16.msra.mxu0 %v853
        %995 = vmatpush.bf16.msra.mxu0 %v852
        %996 = vmatpush.bf16.msra.mxu0 %v851
        %997 = vmatmul.bf16.gmra.mxu0 %v565
        %v998 = vpop.f32.mrf.mxu0
        %v999 = vadd.f32 %v986, %v998
        %v1000 = vpop.f32.mrf.mxu0
        %1001 = vdwg.mxu0
        %1002 = vmatpush.bf16.msra.mxu0 %v866
        %1003 = vmatpush.bf16.msra.mxu0 %v865
        %1004 = vmatpush.bf16.msra.mxu0 %v864
        %1005 = vmatpush.bf16.msra.mxu0 %v863
        %1006 = vmatpush.bf16.msra.mxu0 %v862
        %1007 = vmatpush.bf16.msra.mxu0 %v861
        %1008 = vmatpush.bf16.msra.mxu0 %v860
        %1009 = vmatpush.bf16.msra.mxu0 %v859
        %1010 = vmatmul.bf16.gmra.mxu0 %v566
        %v1011 = vpop.f32.mrf.mxu0
        %v1012 = vadd.f32 %v999, %v1011
        %v1013 = vpop.f32.mrf.mxu0
        %1014 = vdwg.mxu0
        %1015 = vmatpush.bf16.msra.mxu0 %v874
        %1016 = vmatpush.bf16.msra.mxu0 %v873
        %1017 = vmatpush.bf16.msra.mxu0 %v872
        %1018 = vmatpush.bf16.msra.mxu0 %v871
        %1019 = vmatpush.bf16.msra.mxu0 %v870
        %1020 = vmatpush.bf16.msra.mxu0 %v869
        %1021 = vmatpush.bf16.msra.mxu0 %v868
        %1022 = vmatpush.bf16.msra.mxu0 %v867
        %1023 = vmatmul.bf16.gmra.mxu0 %v567
        %v1024 = vpop.f32.mrf.mxu0
        %v1025 = vadd.f32 %v1012, %v1024
        %v1026 = vpop.f32.mrf.mxu0
        %1027 = vdwg.mxu0
        %1028 = vmatpush.bf16.msra.mxu0 %v882
        %1029 = vmatpush.bf16.msra.mxu0 %v881
        %1030 = vmatpush.bf16.msra.mxu0 %v880
        %1031 = vmatpush.bf16.msra.mxu0 %v879
        %1032 = vmatpush.bf16.msra.mxu0 %v878
        %1033 = vmatpush.bf16.msra.mxu0 %v877
        %1034 = vmatpush.bf16.msra.mxu0 %v876
        %1035 = vmatpush.bf16.msra.mxu0 %v875
        %1036 = vmatmul.bf16.gmra.mxu0 %v568
        %v1037 = vpop.f32.mrf.mxu0
        %v1038 = vadd.f32 %v1025, %v1037
        %v1039 = vpop.f32.mrf.mxu0
        %1040 = vdwg.mxu0
        %1041 = vmatpush.bf16.msra.mxu0 %v890
        %1042 = vmatpush.bf16.msra.mxu0 %v889
        %1043 = vmatpush.bf16.msra.mxu0 %v888
        %1044 = vmatpush.bf16.msra.mxu0 %v887
        %1045 = vmatpush.bf16.msra.mxu0 %v886
        %1046 = vmatpush.bf16.msra.mxu0 %v885
        %1047 = vmatpush.bf16.msra.mxu0 %v884
        %1048 = vmatpush.bf16.msra.mxu0 %v883
        %1049 = vmatmul.bf16.gmra.mxu0 %v569
        %v1050 = vpop.f32.mrf.mxu0
        %v1051 = vadd.f32 %v1038, %v1050
        %v1052 = vpop.f32.mrf.mxu0
        %1053 = vdwg.mxu0
        %1054 = vmatpush.bf16.msra.mxu0 %v898
        %1055 = vmatpush.bf16.msra.mxu0 %v897
        %1056 = vmatpush.bf16.msra.mxu0 %v896
        %1057 = vmatpush.bf16.msra.mxu0 %v895
        %1058 = vmatpush.bf16.msra.mxu0 %v894
        %1059 = vmatpush.bf16.msra.mxu0 %v893
        %1060 = vmatpush.bf16.msra.mxu0 %v892
        %1061 = vmatpush.bf16.msra.mxu0 %v891
        %1062 = vmatmul.bf16.gmra.mxu0 %v570
        %v1063 = vpop.f32.mrf.mxu0
        %v1064 = vadd.f32 %v1051, %v1063
        %v1065 = vpop.f32.mrf.mxu0
        %1066 = vdwg.mxu0
        %v1067 = vmax.f32 %v1064, 0.0
        %v1068 = vpack.c.bf16 %v1067, %v1067
        %v1069 = vld [vmem:[%s4] sm:$0xf]
        %v1070 = vld [vmem:[%s4 + $0x4] sm:$0xf]
        %v1071 = vld [vmem:[%s4 + $0x8] sm:$0xf]
        %v1072 = vld [vmem:[%s4 + $0xc] sm:$0xf]
        %v1073 = vld [vmem:[%s4 + $0x10] sm:$0xf]
        %v1074 = vld [vmem:[%s4 + $0x14] sm:$0xf]
        %v1075 = vld [vmem:[%s4 + $0x18] sm:$0xf]
        %v1076 = vld [vmem:[%s4 + $0x1c] sm:$0xf]
        %v1077 = vld [vmem:[%s5] sm:$0x1]
        %v1079 = vperm.slane %v1077, 0
        %v1089 = vunpack.c.l.b16 %v1069
        %v1090 = vunpack.c.l.b16 %v1070
        %v1091 = vunpack.c.l.b16 %v1071
        %v1092 = vunpack.c.l.b16 %v1072
        %v1093 = vunpack.c.l.b16 %v1073
        %v1094 = vunpack.c.l.b16 %v1074
        %v1095 = vunpack.c.l.b16 %v1075
        %v1096 = vunpack.c.l.b16 %v1076
        %v1097 = vpack.c.b16 %v1090, %v1089
        %v1098 = vpack.c.b16 %v1092, %v1091
        %v1099 = vpack.c.b16 %v1094, %v1093
        %v1100 = vpack.c.b16 %v1096, %v1095
        %vm1105 = vcmask 523264
        %v1107 = vsel %vm1105, %v1068, 0
        %1109 = vmatpush.bf16.msra.mxu0 0
        %1110 = vmatpush.bf16.msra.mxu0 0
        %1111 = vmatpush.bf16.msra.mxu0 0
        %1112 = vmatpush.bf16.msra.mxu0 0
        %1113 = vmatpush.bf16.msra.mxu0 %v1100
        %1114 = vmatpush.bf16.msra.mxu0 %v1099
        %1115 = vmatpush.bf16.msra.mxu0 %v1098
        %1116 = vmatpush.bf16.msra.mxu0 %v1097
        %1117 = vmatmul.bf16.gmra.mxu0 %v1107
        %v1118 = vpop.f32.mrf.mxu0
        %v1119 = vadd.f32 %v1079, %v1118
        %v1120 = vpop.f32.mrf.mxu0
        %1121 = vdwg.mxu0
        %v1122 = vmul.f32 %v1119, 0.5
        %v1123 = vmul.f32 %v1122, 1.442695
        %v1124 = vpow.pop %v1123
        %1126 = vrot.lane.b32.xlu0 %v1124, 120
        %v1127 = vpop.permute.xlu0 %1126
        %v1129 = vmul.f32 %v418, %v1127
        %v1130 = vadd.f32 %v1119, %v1129
        %v1131 = vpack.c.bf16 %v1130, %v1130
        %v1132 = vld [vmem:[%s6] sm:$0xf]
        %v1133 = vld [vmem:[%s7] sm:$0x1]
        %v1135 = vperm.slane %v1133, 0
        %vm1137 = vcmask 64512
        %v1139 = vsel %vm1137, %v1131, 0
        %vm1141 = vcmask 1043456
        %v1143 = vsel %vm1141, %v1132, 0
        %1145 = vmatpush.bf16.msra.mxu0 0
        %1146 = vmatpush.bf16.msra.mxu0 0
        %1147 = vmatpush.bf16.msra.mxu0 0
        %1148 = vmatpush.bf16.msra.mxu0 0
        %1149 = vmatpush.bf16.msra.mxu0 0
        %1150 = vmatpush.bf16.msra.mxu0 0
        %1151 = vmatpush.bf16.msra.mxu0 0
        %1152 = vmatpush.bf16.msra.mxu0 %v1143
        %1153 = vmatmul.bf16.gmra.mxu0 %v1139
        %v1154 = vpop.f32.mrf.mxu0
        %v1155 = vadd.f32 %v1135, %v1154
        %v1156 = vpop.f32.mrf.mxu0
        %1157 = vdwg.mxu0
        %v1158 = vmax.f32 %v1155, 0.0
        %v1159 = vpack.c.bf16 %v1158, %v1158
        %v1160 = vld [vmem:[%s8] sm:$0xff]
        %v1161 = vld [vmem:[%s8 + $0x8] sm:$0xff]
        %v1162 = vld [vmem:[%s8 + $0x10] sm:$0xff]
        %v1163 = vld [vmem:[%s8 + $0x18] sm:$0xff]
        %v1164 = vld [vmem:[%s8 + $0x20] sm:$0xff]
        %v1165 = vld [vmem:[%s8 + $0x28] sm:$0xff]
        %v1166 = vld [vmem:[%s8 + $0x30] sm:$0xff]
        %v1167 = vld [vmem:[%s8 + $0x38] sm:$0xff]
        %v1168 = vld [vmem:[%s8 + $0x40] sm:$0xff]
        %v1169 = vld [vmem:[%s8 + $0x48] sm:$0xff]
        %v1170 = vld [vmem:[%s8 + $0x50] sm:$0xff]
        %v1171 = vld [vmem:[%s8 + $0x58] sm:$0xff]
        %v1172 = vld [vmem:[%s8 + $0x60] sm:$0xff]
        %v1173 = vld [vmem:[%s8 + $0x68] sm:$0xff]
        %v1174 = vld [vmem:[%s8 + $0x70] sm:$0xff]
        %v1175 = vld [vmem:[%s8 + $0x78] sm:$0xff]
        %v1176 = vld [vmem:[%s8 + $0x80] sm:$0xff]
        %v1177 = vld [vmem:[%s8 + $0x88] sm:$0xff]
        %v1178 = vld [vmem:[%s8 + $0x90] sm:$0xff]
        %v1179 = vld [vmem:[%s8 + $0x98] sm:$0xff]
        %v1180 = vld [vmem:[%s8 + $0xa0] sm:$0xff]
        %v1181 = vld [vmem:[%s8 + $0xa8] sm:$0xff]
        %v1182 = vld [vmem:[%s8 + $0xb0] sm:$0xff]
        %v1183 = vld [vmem:[%s8 + $0xb8] sm:$0xff]
        %v1184 = vld [vmem:[%s8 + $0xc0] sm:$0xff]
        %v1185 = vld [vmem:[%s8 + $0xc8] sm:$0xff]
        %v1186 = vld [vmem:[%s8 + $0xd0] sm:$0xff]
        %v1187 = vld [vmem:[%s8 + $0xd8] sm:$0xff]
        %v1188 = vld [vmem:[%s8 + $0xe0] sm:$0xff]
        %v1189 = vld [vmem:[%s8 + $0xe8] sm:$0xff]
        %v1190 = vld [vmem:[%s8 + $0xf0] sm:$0xff]
        %v1191 = vld [vmem:[%s8 + $0xf8] sm:$0xff]
        %v1192 = vld [vmem:[%s9] sm:$0xff]
        %v1194 = vperm.slane %v1192, 0
        %v1195 = vperm.slane %v1192, 1
        %v1196 = vperm.slane %v1192, 2
        %v1197 = vperm.slane %v1192, 3
        %v1198 = vperm.slane %v1192, 4
        %v1199 = vperm.slane %v1192, 5
        %v1200 = vperm.slane %v1192, 6
        %v1201 = vperm.slane %v1192, 7
        %v1242 = vunpack.c.l.b16 %v1160
        %v1243 = vunpack.c.h.b16 %v1160
        %v1244 = vunpack.c.l.b16 %v1161
        %v1245 = vunpack.c.h.b16 %v1161
        %v1246 = vunpack.c.l.b16 %v1162
        %v1247 = vunpack.c.h.b16 %v1162
        %v1248 = vunpack.c.l.b16 %v1163
        %v1249 = vunpack.c.h.b16 %v1163
        %v1250 = vunpack.c.l.b16 %v1164
        %v1251 = vunpack.c.h.b16 %v1164
        %v1252 = vunpack.c.l.b16 %v1165
        %v1253 = vunpack.c.h.b16 %v1165
        %v1254 = vunpack.c.l.b16 %v1166
        %v1255 = vunpack.c.h.b16 %v1166
        %v1256 = vunpack.c.l.b16 %v1167
        %v1257 = vunpack.c.h.b16 %v1167
        %v1258 = vunpack.c.l.b16 %v1168
        %v1259 = vunpack.c.h.b16 %v1168
        %v1260 = vunpack.c.l.b16 %v1169
        %v1261 = vunpack.c.h.b16 %v1169
        %v1262 = vunpack.c.l.b16 %v1170
        %v1263 = vunpack.c.h.b16 %v1170
        %v1264 = vunpack.c.l.b16 %v1171
        %v1265 = vunpack.c.h.b16 %v1171
        %v1266 = vunpack.c.l.b16 %v1172
        %v1267 = vunpack.c.h.b16 %v1172
        %v1268 = vunpack.c.l.b16 %v1173
        %v1269 = vunpack.c.h.b16 %v1173
        %v1270 = vunpack.c.l.b16 %v1174
        %v1271 = vunpack.c.h.b16 %v1174
        %v1272 = vunpack.c.l.b16 %v1175
        %v1273 = vunpack.c.h.b16 %v1175
        %v1274 = vunpack.c.l.b16 %v1176
        %v1275 = vunpack.c.h.b16 %v1176
        %v1276 = vunpack.c.l.b16 %v1177
        %v1277 = vunpack.c.h.b16 %v1177
        %v1278 = vunpack.c.l.b16 %v1178
        %v1279 = vunpack.c.h.b16 %v1178
        %v1280 = vunpack.c.l.b16 %v1179
        %v1281 = vunpack.c.h.b16 %v1179
        %v1282 = vunpack.c.l.b16 %v1180
        %v1283 = vunpack.c.h.b16 %v1180
        %v1284 = vunpack.c.l.b16 %v1181
        %v1285 = vunpack.c.h.b16 %v1181
        %v1286 = vunpack.c.l.b16 %v1182
        %v1287 = vunpack.c.h.b16 %v1182
        %v1288 = vunpack.c.l.b16 %v1183
        %v1289 = vunpack.c.h.b16 %v1183
        %v1290 = vunpack.c.l.b16 %v1184
        %v1291 = vunpack.c.h.b16 %v1184
        %v1292 = vunpack.c.l.b16 %v1185
        %v1293 = vunpack.c.h.b16 %v1185
        %v1294 = vunpack.c.l.b16 %v1186
        %v1295 = vunpack.c.h.b16 %v1186
        %v1296 = vunpack.c.l.b16 %v1187
        %v1297 = vunpack.c.h.b16 %v1187
        %v1298 = vunpack.c.l.b16 %v1188
        %v1299 = vunpack.c.h.b16 %v1188
        %v1300 = vunpack.c.l.b16 %v1189
        %v1301 = vunpack.c.h.b16 %v1189
        %v1302 = vunpack.c.l.b16 %v1190
        %v1303 = vunpack.c.h.b16 %v1190
        %v1304 = vunpack.c.l.b16 %v1191
        %v1305 = vunpack.c.h.b16 %v1191
        %v1306 = vpack.c.b16 %v1250, %v1242
        %v1307 = vpack.c.b16 %v1251, %v1243
        %v1308 = vpack.c.b16 %v1252, %v1244
        %v1309 = vpack.c.b16 %v1253, %v1245
        %v1310 = vpack.c.b16 %v1254, %v1246
        %v1311 = vpack.c.b16 %v1255, %v1247
        %v1312 = vpack.c.b16 %v1256, %v1248
        %v1313 = vpack.c.b16 %v1257, %v1249
        %v1314 = vpack.c.b16 %v1266, %v1258
        %v1315 = vpack.c.b16 %v1267, %v1259
        %v1316 = vpack.c.b16 %v1268, %v1260
        %v1317 = vpack.c.b16 %v1269, %v1261
        %v1318 = vpack.c.b16 %v1270, %v1262
        %v1319 = vpack.c.b16 %v1271, %v1263
        %v1320 = vpack.c.b16 %v1272, %v1264
        %v1321 = vpack.c.b16 %v1273, %v1265
        %v1322 = vpack.c.b16 %v1282, %v1274
        %v1323 = vpack.c.b16 %v1283, %v1275
        %v1324 = vpack.c.b16 %v1284, %v1276
        %v1325 = vpack.c.b16 %v1285, %v1277
        %v1326 = vpack.c.b16 %v1286, %v1278
        %v1327 = vpack.c.b16 %v1287, %v1279
        %v1328 = vpack.c.b16 %v1288, %v1280
        %v1329 = vpack.c.b16 %v1289, %v1281
        %v1330 = vpack.c.b16 %v1298, %v1290
        %v1331 = vpack.c.b16 %v1299, %v1291
        %v1332 = vpack.c.b16 %v1300, %v1292
        %v1333 = vpack.c.b16 %v1301, %v1293
        %v1334 = vpack.c.b16 %v1302, %v1294
        %v1335 = vpack.c.b16 %v1303, %v1295
        %v1336 = vpack.c.b16 %v1304, %v1296
        %v1337 = vpack.c.b16 %v1305, %v1297
        %v1371 = vsel %vm1105, %v1159, 0
        %1373 = vmatpush.bf16.msra.mxu0 0
        %1374 = vmatpush.bf16.msra.mxu0 0
        %1375 = vmatpush.bf16.msra.mxu0 0
        %1376 = vmatpush.bf16.msra.mxu0 0
        %1377 = vmatpush.bf16.msra.mxu0 %v1330
        %1378 = vmatpush.bf16.msra.mxu0 %v1322
        %1379 = vmatpush.bf16.msra.mxu0 %v1314
        %1380 = vmatpush.bf16.msra.mxu0 %v1306
        %1381 = vmatmul.bf16.gmra.mxu0 %v1371
        %v1382 = vpop.f32.mrf.mxu0
        %v1383 = vadd.f32 %v1194, %v1382
        %v1384 = vpop.f32.mrf.mxu0
        %1385 = vdwg.mxu0
        %1386 = vmatpush.bf16.msra.mxu0 0
        %1387 = vmatpush.bf16.msra.mxu0 0
        %1388 = vmatpush.bf16.msra.mxu0 0
        %1389 = vmatpush.bf16.msra.mxu0 0
        %1390 = vmatpush.bf16.msra.mxu0 %v1331
        %1391 = vmatpush.bf16.msra.mxu0 %v1323
        %1392 = vmatpush.bf16.msra.mxu0 %v1315
        %1393 = vmatpush.bf16.msra.mxu0 %v1307
        %1394 = vmatmul.bf16.gmra.mxu0 %v1371
        %v1395 = vpop.f32.mrf.mxu0
        %v1396 = vadd.f32 %v1195, %v1395
        %v1397 = vpop.f32.mrf.mxu0
        %1398 = vdwg.mxu0
        %1399 = vmatpush.bf16.msra.mxu0 0
        %1400 = vmatpush.bf16.msra.mxu0 0
        %1401 = vmatpush.bf16.msra.mxu0 0
        %1402 = vmatpush.bf16.msra.mxu0 0
        %1403 = vmatpush.bf16.msra.mxu0 %v1332
        %1404 = vmatpush.bf16.msra.mxu0 %v1324
        %1405 = vmatpush.bf16.msra.mxu0 %v1316
        %1406 = vmatpush.bf16.msra.mxu0 %v1308
        %1407 = vmatmul.bf16.gmra.mxu0 %v1371
        %v1408 = vpop.f32.mrf.mxu0
        %v1409 = vadd.f32 %v1196, %v1408
        %v1410 = vpop.f32.mrf.mxu0
        %1411 = vdwg.mxu0
        %1412 = vmatpush.bf16.msra.mxu0 0
        %1413 = vmatpush.bf16.msra.mxu0 0
        %1414 = vmatpush.bf16.msra.mxu0 0
        %1415 = vmatpush.bf16.msra.mxu0 0
        %1416 = vmatpush.bf16.msra.mxu0 %v1333
        %1417 = vmatpush.bf16.msra.mxu0 %v1325
        %1418 = vmatpush.bf16.msra.mxu0 %v1317
        %1419 = vmatpush.bf16.msra.mxu0 %v1309
        %1420 = vmatmul.bf16.gmra.mxu0 %v1371
        %v1421 = vpop.f32.mrf.mxu0
        %v1422 = vadd.f32 %v1197, %v1421
        %v1423 = vpop.f32.mrf.mxu0
        %1424 = vdwg.mxu0
        %1425 = vmatpush.bf16.msra.mxu0 0
        %1426 = vmatpush.bf16.msra.mxu0 0
        %1427 = vmatpush.bf16.msra.mxu0 0
        %1428 = vmatpush.bf16.msra.mxu0 0
        %1429 = vmatpush.bf16.msra.mxu0 %v1334
        %1430 = vmatpush.bf16.msra.mxu0 %v1326
        %1431 = vmatpush.bf16.msra.mxu0 %v1318
        %1432 = vmatpush.bf16.msra.mxu0 %v1310
        %1433 = vmatmul.bf16.gmra.mxu0 %v1371
        %v1434 = vpop.f32.mrf.mxu0
        %v1435 = vadd.f32 %v1198, %v1434
        %v1436 = vpop.f32.mrf.mxu0
        %1437 = vdwg.mxu0
        %1438 = vmatpush.bf16.msra.mxu0 0
        %1439 = vmatpush.bf16.msra.mxu0 0
        %1440 = vmatpush.bf16.msra.mxu0 0
        %1441 = vmatpush.bf16.msra.mxu0 0
        %1442 = vmatpush.bf16.msra.mxu0 %v1335
        %1443 = vmatpush.bf16.msra.mxu0 %v1327
        %1444 = vmatpush.bf16.msra.mxu0 %v1319
        %1445 = vmatpush.bf16.msra.mxu0 %v1311
        %1446 = vmatmul.bf16.gmra.mxu0 %v1371
        %v1447 = vpop.f32.mrf.mxu0
        %v1448 = vadd.f32 %v1199, %v1447
        %v1449 = vpop.f32.mrf.mxu0
        %1450 = vdwg.mxu0
        %1451 = vmatpush.bf16.msra.mxu0 0
        %1452 = vmatpush.bf16.msra.mxu0 0
        %1453 = vmatpush.bf16.msra.mxu0 0
        %1454 = vmatpush.bf16.msra.mxu0 0
        %1455 = vmatpush.bf16.msra.mxu0 %v1336
        %1456 = vmatpush.bf16.msra.mxu0 %v1328
        %1457 = vmatpush.bf16.msra.mxu0 %v1320
        %1458 = vmatpush.bf16.msra.mxu0 %v1312
        %1459 = vmatmul.bf16.gmra.mxu0 %v1371
        %v1460 = vpop.f32.mrf.mxu0
        %v1461 = vadd.f32 %v1200, %v1460
        %v1462 = vpop.f32.mrf.mxu0
        %1463 = vdwg.mxu0
        %1464 = vmatpush.bf16.msra.mxu0 0
        %1465 = vmatpush.bf16.msra.mxu0 0
        %1466 = vmatpush.bf16.msra.mxu0 0
        %1467 = vmatpush.bf16.msra.mxu0 0
        %1468 = vmatpush.bf16.msra.mxu0 %v1337
        %1469 = vmatpush.bf16.msra.mxu0 %v1329
        %1470 = vmatpush.bf16.msra.mxu0 %v1321
        %1471 = vmatpush.bf16.msra.mxu0 %v1313
        %1472 = vmatmul.bf16.gmra.mxu0 %v1371
        %v1473 = vpop.f32.mrf.mxu0
        %v1474 = vadd.f32 %v1201, %v1473
        %v1475 = vpop.f32.mrf.mxu0
        %1476 = vdwg.mxu0
        %v1477 = vmul.f32 %v1383, 0.5
        %v1478 = vmul.f32 %v1396, 0.5
        %v1479 = vmul.f32 %v1409, 0.5
        %v1480 = vmul.f32 %v1422, 0.5
        %v1481 = vmul.f32 %v1435, 0.5
        %v1482 = vmul.f32 %v1448, 0.5
        %v1483 = vmul.f32 %v1461, 0.5
        %v1484 = vmul.f32 %v1474, 0.5
        %v1485 = vtanh.pop %v1477
        %v1486 = vtanh.pop %v1478
        %v1487 = vtanh.pop %v1479
        %v1488 = vtanh.pop %v1480
        %v1489 = vtanh.pop %v1481
        %v1490 = vtanh.pop %v1482
        %v1491 = vtanh.pop %v1483
        %v1492 = vtanh.pop %v1484
        %v1493 = vmul.f32 %v1485, 0.5
        %v1494 = vmul.f32 %v1486, 0.5
        %v1495 = vmul.f32 %v1487, 0.5
        %v1496 = vmul.f32 %v1488, 0.5
        %v1497 = vmul.f32 %v1489, 0.5
        %v1498 = vmul.f32 %v1490, 0.5
        %v1499 = vmul.f32 %v1491, 0.5
        %v1500 = vmul.f32 %v1492, 0.5
        %v1501 = vadd.f32 %v1493, 0.5
        %v1502 = vadd.f32 %v1494, 0.5
        %v1503 = vadd.f32 %v1495, 0.5
        %v1504 = vadd.f32 %v1496, 0.5
        %v1505 = vadd.f32 %v1497, 0.5
        %v1506 = vadd.f32 %v1498, 0.5
        %v1507 = vadd.f32 %v1499, 0.5
        %v1508 = vadd.f32 %v1500, 0.5
        %v1509 = vpack.c.bf16 %v1502, %v1501
        %v1510 = vpack.c.bf16 %v1504, %v1503
        %v1511 = vpack.c.bf16 %v1506, %v1505
        %v1512 = vpack.c.bf16 %v1508, %v1507
        %1513 = vst [vmem:[%s396] sm:$0xff] %v1509
        %1514 = vst [vmem:[%s396 + $0x8] sm:$0xff] %v1510
        %1515 = vst [vmem:[%s396 + $0x10] sm:$0xff] %v1511
        %1516 = vst [vmem:[%s396 + $0x18] sm:$0xff] %v1512
        %vm1517 = vcmask 130048
        %1518 = vst.msk [vmem:[%s403] sm:$0xff] %vm1517, %v1119
        %1520 = vrot.lane.b32.xlu0 %v1130, 16
        %v1521 = vpop.permute.xlu0 %1520
        %vm1523 = vcmask 195712
        %1524 = vst.msk [vmem:[%s403] sm:$0xff] %vm1523, %v1521
        %s1525 = sand.u32 %s257, 1
        %s1526 = scalar_lea.sflag [#allocation3], %s1525
        %s1527 = sand.u32 %s257, 1
        %s1528 = smul.addr %s1527, 32
        %s1529 = scalar_lea.vmem [#allocation2], %s1528
        %s1530 = sand.u32 %s283, 1
        %s1531 = scalar_lea.sflag [#allocation5], %s1530
        %s1532 = sand.u32 %s283, 1
        %s1533 = smul.addr %s1532, 8
        %s1534 = scalar_lea.vmem [#allocation4], %s1533
        // Predicated region
        $region61: #{tpu_custom_call.1} parent=59 // pred_check
          %p1535 = pneg %p267
        $region62: #{tpu_custom_call.1} parent=59 // pred_check_branch
          %1537 = sbr.rel (%p1535) target = $region64
        $region63: #{tpu_custom_call.1} parent=59 // pred_region
          %1539 = vsyncadd %s1526, 0
          %s1540 = smul.addr %s29, 8
          %s1541 = smul.addr %s1540, 4
          %s1542 = scalar_lea.hbm %s10, %s1541
          %s1544 = sshll.u32 %s1529, 4
          %s1545 = int_to_ptr.vmem [resolvable:$true] %s1544
          %s1546 = sshll.u32 %s1542, 4
          %s1547 = int_to_ptr.hbm [resolvable:$true] %s1546
          %1549 = dma.vmem_to_hbm [thread:$0]  %s1545, 512, %s1547, %s1526
        $region64: #{tpu_custom_call.1} parent=59 // pred_fallthru
          _
        // Predicated region
        $region65: #{tpu_custom_call.1} parent=59 // pred_check
          %p1550 = pneg %p293
        $region66: #{tpu_custom_call.1} parent=59 // pred_check_branch
          %1552 = sbr.rel (%p1550) target = $region68
        $region67: #{tpu_custom_call.1} parent=59 // pred_region
          %1554 = vsyncadd %s1531, 0
          %s1555 = smul.addr %s29, 8
          %s1556 = scalar_lea.hbm %s11, %s1555
          %s1558 = sshll.u32 %s1534, 4
          %s1559 = int_to_ptr.vmem [resolvable:$true] %s1558
          %s1560 = sshll.u32 %s1556, 4
          %s1561 = int_to_ptr.hbm [resolvable:$true] %s1560
          %1563 = dma.vmem_to_hbm [thread:$0]  %s1559, 128, %s1561, %s1531
        $region68: #{tpu_custom_call.1} parent=59 // pred_fallthru
          _
      $region60: #{tpu_custom_call.1} parent=5 // pred_fallthru
        _
      %p1564 = scmp.le.s32.totalorder 2, %s24
      // Predicated region
      $region69: #{tpu_custom_call.1} parent=5 // pred_check
        %p1565 = pneg %p1564
      $region70: #{tpu_custom_call.1} parent=5 // pred_check_branch
        %1567 = sbr.rel (%p1565) target = $region72
      $region71: #{tpu_custom_call.1} parent=5 // pred_region
        %s1568 = ssub.s32 %s24, 2
        // Predicated region
        $region73: #{tpu_custom_call.1} parent=71 // pred_check
          %p1569 = pneg %p273
        $region74: #{tpu_custom_call.1} parent=71 // pred_check_branch
          %1571 = sbr.rel (%p1569) target = $region76
        $region75: #{tpu_custom_call.1} parent=71 // pred_region
          %s1572 = sand.u32 %s258, 1
          %s1573 = scalar_lea.sflag [#allocation3], %s1572
          %s1574 = sand.u32 %s258, 1
          %s1575 = smul.addr %s1574, 32
          %s1576 = scalar_lea.vmem [#allocation2], %s1575
          %1578 = dma.done %s1573, 512
        $region76: #{tpu_custom_call.1} parent=71 // pred_fallthru
          _
        // Predicated region
        $region77: #{tpu_custom_call.1} parent=71 // pred_check
          %p1579 = pneg %p299
        $region78: #{tpu_custom_call.1} parent=71 // pred_check_branch
          %1581 = sbr.rel (%p1579) target = $region80
        $region79: #{tpu_custom_call.1} parent=71 // pred_region
          %s1582 = sand.u32 %s284, 1
          %s1583 = scalar_lea.sflag [#allocation5], %s1582
          %s1584 = sand.u32 %s284, 1
          %s1585 = smul.addr %s1584, 8
          %s1586 = scalar_lea.vmem [#allocation4], %s1585
          %1588 = dma.done %s1583, 128
        $region80: #{tpu_custom_call.1} parent=71 // pred_fallthru
          _
      $region72: #{tpu_custom_call.1} parent=5 // pred_fallthru
        _
    $region6: #{tpu_custom_call.1} parent=1 // loop_footer
      %s28 = sadd.s32 1, %s24
    $region7: #{tpu_custom_call.1} parent=1 // loop_footer_branch
      %23 = sbr.rel target = $region3
    $region8: #{tpu_custom_call.1} parent=1 // loop_exit
      _
    %1589 = vsyncpa [#allocation3], 1
    %s1590 = scalar_lea.sflag [#allocation3], 1
    %1591 = vsyncpa %s1590, 1
    %1592 = vsyncpa [#allocation5], 1
    %s1593 = scalar_lea.sflag [#allocation5], 1
    %1594 = vsyncpa %s1593, 1

</llo_original>
